<compile_context>
chip_gen: v7x
topology: tpu7x:2x2x1
jax: 0.10.0
libtpu: 0.0.40
codegen_flags: <defaults>
</compile_context>

<pallas_src>
import functools

import jax
import jax.numpy as jnp
import numpy as np
from jax.experimental import pallas as pl
from jax.experimental.pallas import tpu as pltpu


# ----------------------------------------------------------------------------
# Fused kernel.
# ----------------------------------------------------------------------------
def _unet_block_kernel(p0_ref, s_ref, t1_ref, t2_ref, b1_ref, b2_ref,
                       f_ref, ft_ref, rmask_ref, g_ref, bt_ref, o_ref,
                       *, count, eps):
    """Fused conv3x3 + BN(train) + ReLU, applied twice, on lane-dense padded slabs.

    Shapes (R = N*(H+2), L = (W+2)*Cout):
      p0_ref    (R, (W+2)*Cin)     padded lane-dense input
      s_ref     (2, R, R)          row-shift matrices (source row q-1 / q+1)
      t1_ref    (3, (W+2)*Cin, L)  Toeplitz conv1 weights, one per kernel row dy
      t2_ref    (3, L, L)          Toeplitz conv2 weights
      b1_ref/b2_ref (1, L)         conv biases broadcast to lanes (0 on pad lanes)
      f_ref     (L, Cout)          lane -> channel fold (0 rows at pad lanes)
      ft_ref    (Cout, L)          channel -> lane broadcast (0 cols at pad lanes)
      rmask_ref (R, 1)             1.0 on real rows, 0.0 on padding rows
      g_ref/bt_ref (1, Cout)       BatchNorm gamma / beta (shared by both BNs)
      o_ref     (R, L)             output, same padded lane-dense layout
    """
    fold = f_ref[...]
    bcast = ft_ref[...]
    rmask = rmask_ref[...]
    gamma = g_ref[...]
    beta = bt_ref[...]

    def lane_broadcast(v):
        # (1, Cout) -> (1, L); zero on padding lane groups (via bcast's zero cols).
        v8 = jnp.broadcast_to(v, (8, v.shape[1]))
        return jnp.dot(v8, bcast, preferred_element_type=jnp.float32)[0:1, :]

    def conv_bn_relu(p, t_ref, b_lane):
        # --- 3x3 conv: row shifts + column taps expressed as MXU matmuls ------
        up = jnp.dot(s_ref[0], p, preferred_element_type=jnp.float32)    # row q-1
        down = jnp.dot(s_ref[1], p, preferred_element_type=jnp.float32)  # row q+1
        acc = jnp.dot(up, t_ref[0], preferred_element_type=jnp.float32)
        acc = acc + jnp.dot(p, t_ref[1], preferred_element_type=jnp.float32)
        acc = acc + jnp.dot(down, t_ref[2], preferred_element_type=jnp.float32)
        acc = (acc + b_lane) * rmask      # exact zeros at every padding slot

        # --- BatchNorm (training-mode batch stats) + ReLU, single-pass stats --
        ch_sum = jnp.sum(jnp.dot(acc, fold, preferred_element_type=jnp.float32),
                         axis=0, keepdims=True)                          # (1, Cout)
        ch_sq = jnp.sum(jnp.dot(acc * acc, fold,
                                preferred_element_type=jnp.float32),
                        axis=0, keepdims=True)                           # (1, Cout)
        mean = ch_sum / count
        var = ch_sq / count - mean * mean                                # biased var
        scale = jax.lax.rsqrt(var + eps) * gamma
        shift = beta - mean * scale
        y = acc * lane_broadcast(scale) + lane_broadcast(shift)
        return jnp.maximum(y, 0.0) * rmask  # re-zero padding for the next conv

    y1 = conv_bn_relu(p0_ref[...], t1_ref, b1_ref[...])
    o_ref[...] = conv_bn_relu(y1, t2_ref, b2_ref[...])


# ----------------------------------------------------------------------------
# Wrapper: layout / constant preparation + pallas_call.
# ----------------------------------------------------------------------------
def _structural_constants(N, H, W, Cout):
    """Host-side 0/1 layout constants (shapes are static)."""
    Hp, Wp = H + 2, W + 2
    R, L = N * Hp, Wp * Cout

    shift = np.zeros((2, R, R), np.float32)
    rmask = np.zeros((R, 1), np.float32)
    for q in range(R):
        if 1 <= (q % Hp) <= H:              # real (non-padding) row
            rmask[q, 0] = 1.0
            shift[0, q, q - 1] = 1.0        # source row q-1  (kernel row dy=0)
            shift[1, q, q + 1] = 1.0        # source row q+1  (kernel row dy=2)

    # sel[wp, wq, dx] = 1 iff output column wq is real and input column wp = wq+dx-1.
    sel = np.zeros((Wp, Wp, 3), np.float32)
    for wq in range(1, W + 1):
        for dx in range(3):
            sel[wq + dx - 1, wq, dx] = 1.0

    # fold[wq*Cout+c, c] = 1 for real wq only (lane -> channel reduction matrix).
    fold = np.zeros((L, Cout), np.float32)
    for wq in range(1, W + 1):
        for c in range(Cout):
            fold[wq * Cout + c, c] = 1.0

    return shift, rmask, sel, fold


def unet_block_forward(x_nchw, params, eps=1e-5):
    """Pallas forward of UNetBlock; takes/returns NCHW like the PyTorch module."""
    N, Cin, H, W = x_nchw.shape
    Cout = params["w1"].shape[-1]
    Hp, Wp = H + 2, W + 2
    R, L = N * Hp, Wp * Cout

    shift_np, rmask_np, sel_np, fold_np = _structural_constants(N, H, W, Cout)
    shift = jnp.asarray(shift_np)
    rmask = jnp.asarray(rmask_np)
    sel = jnp.asarray(sel_np)
    fold = jnp.asarray(fold_np)
    bcast = jnp.asarray(np.ascontiguousarray(fold_np.T))

    # Toeplitz weights: T[dy, wp*Ci+ci, wq*Cout+co] = w_hwio[dy, wp-wq+1, ci, co]
    # (zero outside the 3-tap window / at padding columns).  Weight prep -- in a
    # real pipeline this is folded into parameter loading, done once.
    def toeplitz(w_hwio):
        ci = w_hwio.shape[2]
        t = jnp.einsum("pqx,yxio->ypiqo", sel, w_hwio)
        return t.reshape(3, Wp * ci, L)

    t1 = toeplitz(params["w1"])                                   # (3, Wp*Cin, L)
    t2 = toeplitz(params["w2"])                                   # (3, L, L)
    b1_lane = jnp.matmul(params["b1"].reshape(1, Cout), bcast)    # (1, L)
    b2_lane = jnp.matmul(params["b2"].reshape(1, Cout), bcast)    # (1, L)
    gamma = params["gamma"].reshape(1, Cout)
    beta = params["beta"].reshape(1, Cout)

    # Padded, lane-dense input slab: row = n*(H+2)+hp, lane = wp*Cin + ci.
    x_nhwc = jnp.transpose(x_nchw, (0, 2, 3, 1))
    p0 = jnp.pad(x_nhwc, ((0, 0), (1, 1), (1, 1), (0, 0))).reshape(R, Wp * Cin)

    kern = functools.partial(_unet_block_kernel, count=float(N * H * W), eps=eps)

    def full_spec(shape):
        zeros = (0,) * len(shape)
        return pl.BlockSpec(tuple(shape), lambda i: zeros)

    operands = (p0, shift, t1, t2, b1_lane, b2_lane, fold, bcast, rmask, gamma, beta)
    out = pl.pallas_call(
        kern,
        out_shape=jax.ShapeDtypeStruct((R, L), jnp.float32),
        grid=(1,),  # whole working set (<1 MiB incl. double buffering) fits in VMEM
        in_specs=[full_spec(op.shape) for op in operands],
        out_specs=pl.BlockSpec((R, L), lambda i: (0, 0)),
        compiler_params=pltpu.CompilerParams(dimension_semantics=("arbitrary",)),
    )(*operands)

    # (R, L) padded lane-dense -> NCHW interior.
    out = out.reshape(N, Hp, Wp, Cout)[:, 1:H + 1, 1:W + 1, :]
    return jnp.transpose(out, (0, 3, 1, 2))


# ----------------------------------------------------------------------------
# Pure-JAX reference (training-mode BatchNorm with batch statistics).
# TODO(synk): running_mean / running_var buffer updates (a training-mode side
# effect of nn.BatchNorm2d.forward) are not materialized; only the output is.
# ----------------------------------------------------------------------------
def unet_block_reference(x_nchw, params, eps=1e-5):
    def conv(x, w_hwio, b):
        w_oihw = jnp.transpose(w_hwio, (3, 2, 0, 1))
        y = jax.lax.conv_general_dilated(
            x, w_oihw, window_strides=(1, 1), padding="SAME",
            dimension_numbers=("NCHW", "OIHW", "NCHW"),
            precision=jax.lax.Precision.HIGHEST)
        return y + b[None, :, None, None]

    def bn_relu(x, g, b):
        mean = jnp.mean(x, axis=(0, 2, 3), keepdims=True)
        var = jnp.mean((x - mean) ** 2, axis=(0, 2, 3), keepdims=True)
        y = (x - mean) / jnp.sqrt(var + eps)
        y = y * g[None, :, None, None] + b[None, :, None, None]
        return jnp.maximum(y, 0.0)

    x = bn_relu(conv(x_nchw, params["w1"], params["b1"]),
                params["gamma"], params["beta"])
    x = bn_relu(conv(x, params["w2"], params["b2"]),
                params["gamma"], params["beta"])
    return x


if __name__ == "__main__":
    key = jax.random.PRNGKey(0)
    k_x, k_w1, k_b1, k_w2, k_b2 = jax.random.split(key, 5)

    N, Cin, Cout, H, W = 2, 4, 8, 16, 16

    # Deterministic synthetic parameters (shapes as in nn.Conv2d / nn.BatchNorm2d).
    params = {
        "w1": jax.random.normal(k_w1, (3, 3, Cin, Cout), jnp.float32) * 0.1,
        "b1": jax.random.normal(k_b1, (Cout,), jnp.float32) * 0.1,
        "w2": jax.random.normal(k_w2, (3, 3, Cout, Cout), jnp.float32) * 0.1,
        "b2": jax.random.normal(k_b2, (Cout,), jnp.float32) * 0.1,
        "gamma": jnp.ones((Cout,), jnp.float32),   # BatchNorm2d weight init
        "beta": jnp.zeros((Cout,), jnp.float32),   # BatchNorm2d bias init
    }

    x = jax.random.normal(k_x, (N, Cin, H, W), jnp.float32)

    out = jax.block_until_ready(unet_block_forward(x, params))
    ref = jax.block_until_ready(unet_block_reference(x, params))

    assert out.shape == (N, Cout, H, W), out.shape
    max_err = float(jnp.max(jnp.abs(out - ref)))
    # Tolerance allows for MXU pass decomposition of f32 matmuls.
    assert jnp.allclose(out, ref, atol=5e-3, rtol=5e-3), max_err

    print("KERNEL_OK")
</pallas_src>

<mosaic_0001>
module attributes {stable_mosaic.version = 11 : i64} {
  func.func @_unet_block_kernel(%arg0: i32, %arg1: memref<36x72xf32, #tpu.memory_space<vmem>>, %arg2: memref<2x36x36xf32, #tpu.memory_space<vmem>>, %arg3: memref<3x72x144xf32, #tpu.memory_space<vmem>>, %arg4: memref<3x144x144xf32, #tpu.memory_space<vmem>>, %arg5: memref<1x144xf32, #tpu.memory_space<vmem>>, %arg6: memref<1x144xf32, #tpu.memory_space<vmem>>, %arg7: memref<144x8xf32, #tpu.memory_space<vmem>>, %arg8: memref<8x144xf32, #tpu.memory_space<vmem>>, %arg9: memref<36x1xf32, #tpu.memory_space<vmem>>, %arg10: memref<1x8xf32, #tpu.memory_space<vmem>>, %arg11: memref<1x8xf32, #tpu.memory_space<vmem>>, %arg12: memref<36x144xf32, #tpu.memory_space<vmem>>) attributes {dimension_semantics = [#tpu.dimension_semantics<arbitrary>], iteration_bounds = array<i64: 1>, scalar_prefetch = 0 : i64, scratch_operands = 0 : i64, tpu.core_type = #tpu.core_type<tc>, window_params = [{pipeline_mode = #tpu.pipeline_mode<synchronous>, transform_indices = @transform_0, window_bounds = array<i64: 36, 72>}, {pipeline_mode = #tpu.pipeline_mode<synchronous>, transform_indices = @transform_1, window_bounds = array<i64: 2, 36, 36>}, {pipeline_mode = #tpu.pipeline_mode<synchronous>, transform_indices = @transform_2, window_bounds = array<i64: 3, 72, 144>}, {pipeline_mode = #tpu.pipeline_mode<synchronous>, transform_indices = @transform_3, window_bounds = array<i64: 3, 144, 144>}, {pipeline_mode = #tpu.pipeline_mode<synchronous>, transform_indices = @transform_4, window_bounds = array<i64: 1, 144>}, {pipeline_mode = #tpu.pipeline_mode<synchronous>, transform_indices = @transform_5, window_bounds = array<i64: 1, 144>}, {pipeline_mode = #tpu.pipeline_mode<synchronous>, transform_indices = @transform_6, window_bounds = array<i64: 144, 8>}, {pipeline_mode = #tpu.pipeline_mode<synchronous>, transform_indices = @transform_7, window_bounds = array<i64: 8, 144>}, {pipeline_mode = #tpu.pipeline_mode<synchronous>, transform_indices = @transform_8, window_bounds = array<i64: 36, 1>}, {pipeline_mode = #tpu.pipeline_mode<synchronous>, transform_indices = @transform_9, window_bounds = array<i64: 1, 8>}, {pipeline_mode = #tpu.pipeline_mode<synchronous>, transform_indices = @transform_10, window_bounds = array<i64: 1, 8>}, {pipeline_mode = #tpu.pipeline_mode<synchronous>, transform_indices = @transform_11, window_bounds = array<i64: 36, 144>}]} {
    %c0 = arith.constant 0 : index
    %c0_0 = arith.constant 0 : index
    %0 = vector.load %arg7[%c0, %c0_0] : memref<144x8xf32, #tpu.memory_space<vmem>>, vector<144x8xf32>
    %c0_1 = arith.constant 0 : index
    %c0_2 = arith.constant 0 : index
    %1 = vector.load %arg8[%c0_1, %c0_2] : memref<8x144xf32, #tpu.memory_space<vmem>>, vector<8x144xf32>
    %c0_3 = arith.constant 0 : index
    %c0_4 = arith.constant 0 : index
    %2 = vector.load %arg9[%c0_3, %c0_4] : memref<36x1xf32, #tpu.memory_space<vmem>>, vector<36x1xf32>
    %c0_5 = arith.constant 0 : index
    %c0_6 = arith.constant 0 : index
    %3 = vector.load %arg10[%c0_5, %c0_6] : memref<1x8xf32, #tpu.memory_space<vmem>>, vector<1x8xf32>
    %c0_7 = arith.constant 0 : index
    %c0_8 = arith.constant 0 : index
    %4 = vector.load %arg11[%c0_7, %c0_8] : memref<1x8xf32, #tpu.memory_space<vmem>>, vector<1x8xf32>
    %c0_9 = arith.constant 0 : index
    %c0_10 = arith.constant 0 : index
    %5 = vector.load %arg1[%c0_9, %c0_10] : memref<36x72xf32, #tpu.memory_space<vmem>>, vector<36x72xf32>
    %c0_11 = arith.constant 0 : index
    %c0_12 = arith.constant 0 : index
    %6 = vector.load %arg5[%c0_11, %c0_12] : memref<1x144xf32, #tpu.memory_space<vmem>>, vector<1x144xf32>
    %c0_13 = arith.constant 0 : index
    %c0_14 = arith.constant 0 : index
    %c0_15 = arith.constant 0 : index
    %7 = vector.load %arg2[%c0_13, %c0_14, %c0_15] : memref<2x36x36xf32, #tpu.memory_space<vmem>>, vector<1x36x36xf32>
    %8 = vector.shape_cast %7 : vector<1x36x36xf32> to vector<36x36xf32>
    %cst = arith.constant dense<0.000000e+00> : vector<36x72xf32>
    %9 = tpu.matmul %8, %5, %cst {dimension_numbers = #tpu.dot_dimension_numbers<[1], [0], [0], [1], [0, 0, 1, 1], [], []>} : vector<36x36xf32>, vector<36x72xf32>, vector<36x72xf32> -> vector<36x72xf32>
    %c1 = arith.constant 1 : index
    %c0_16 = arith.constant 0 : index
    %c0_17 = arith.constant 0 : index
    %10 = vector.load %arg2[%c1, %c0_16, %c0_17] : memref<2x36x36xf32, #tpu.memory_space<vmem>>, vector<1x36x36xf32>
    %11 = vector.shape_cast %10 : vector<1x36x36xf32> to vector<36x36xf32>
    %cst_18 = arith.constant dense<0.000000e+00> : vector<36x72xf32>
    %12 = tpu.matmul %11, %5, %cst_18 {dimension_numbers = #tpu.dot_dimension_numbers<[1], [0], [0], [1], [0, 0, 1, 1], [], []>} : vector<36x36xf32>, vector<36x72xf32>, vector<36x72xf32> -> vector<36x72xf32>
    %c0_19 = arith.constant 0 : index
    %c0_20 = arith.constant 0 : index
    %c0_21 = arith.constant 0 : index
    %13 = vector.load %arg3[%c0_19, %c0_20, %c0_21] : memref<3x72x144xf32, #tpu.memory_space<vmem>>, vector<1x72x144xf32>
    %14 = vector.shape_cast %13 : vector<1x72x144xf32> to vector<72x144xf32>
    %cst_22 = arith.constant dense<0.000000e+00> : vector<36x144xf32>
    %15 = tpu.matmul %9, %14, %cst_22 {dimension_numbers = #tpu.dot_dimension_numbers<[1], [0], [0], [1], [0, 0, 1, 1], [], []>} : vector<36x72xf32>, vector<72x144xf32>, vector<36x144xf32> -> vector<36x144xf32>
    %c1_23 = arith.constant 1 : index
    %c0_24 = arith.constant 0 : index
    %c0_25 = arith.constant 0 : index
    %16 = vector.load %arg3[%c1_23, %c0_24, %c0_25] : memref<3x72x144xf32, #tpu.memory_space<vmem>>, vector<1x72x144xf32>
    %17 = vector.shape_cast %16 : vector<1x72x144xf32> to vector<72x144xf32>
    %cst_26 = arith.constant dense<0.000000e+00> : vector<36x144xf32>
    %18 = tpu.matmul %5, %17, %cst_26 {dimension_numbers = #tpu.dot_dimension_numbers<[1], [0], [0], [1], [0, 0, 1, 1], [], []>} : vector<36x72xf32>, vector<72x144xf32>, vector<36x144xf32> -> vector<36x144xf32>
    %19 = arith.addf %15, %18 : vector<36x144xf32>
    %c2 = arith.constant 2 : index
    %c0_27 = arith.constant 0 : index
    %c0_28 = arith.constant 0 : index
    %20 = vector.load %arg3[%c2, %c0_27, %c0_28] : memref<3x72x144xf32, #tpu.memory_space<vmem>>, vector<1x72x144xf32>
    %21 = vector.shape_cast %20 : vector<1x72x144xf32> to vector<72x144xf32>
    %cst_29 = arith.constant dense<0.000000e+00> : vector<36x144xf32>
    %22 = tpu.matmul %12, %21, %cst_29 {dimension_numbers = #tpu.dot_dimension_numbers<[1], [0], [0], [1], [0, 0, 1, 1], [], []>} : vector<36x72xf32>, vector<72x144xf32>, vector<36x144xf32> -> vector<36x144xf32>
    %23 = arith.addf %19, %22 : vector<36x144xf32>
    %24 = vector.broadcast %6 : vector<1x144xf32> to vector<36x144xf32>
    %25 = arith.addf %23, %24 : vector<36x144xf32>
    %26 = vector.broadcast %2 : vector<36x1xf32> to vector<36x144xf32>
    %27 = arith.mulf %25, %26 : vector<36x144xf32>
    %cst_30 = arith.constant dense<0.000000e+00> : vector<36x8xf32>
    %28 = tpu.matmul %27, %0, %cst_30 {dimension_numbers = #tpu.dot_dimension_numbers<[1], [0], [0], [1], [0, 0, 1, 1], [], []>} : vector<36x144xf32>, vector<144x8xf32>, vector<36x8xf32> -> vector<36x8xf32>
    %cst_31 = arith.constant dense<0.000000e+00> : vector<8xf32>
    %29 = vector.multi_reduction <add>, %28, %cst_31 [0] : vector<36x8xf32> to vector<8xf32>
    %30 = vector.shape_cast %29 : vector<8xf32> to vector<1x8xf32>
    %31 = arith.mulf %27, %27 : vector<36x144xf32>
    %cst_32 = arith.constant dense<0.000000e+00> : vector<36x8xf32>
    %32 = tpu.matmul %31, %0, %cst_32 {dimension_numbers = #tpu.dot_dimension_numbers<[1], [0], [0], [1], [0, 0, 1, 1], [], []>} : vector<36x144xf32>, vector<144x8xf32>, vector<36x8xf32> -> vector<36x8xf32>
    %cst_33 = arith.constant dense<0.000000e+00> : vector<8xf32>
    %33 = vector.multi_reduction <add>, %32, %cst_33 [0] : vector<36x8xf32> to vector<8xf32>
    %34 = vector.shape_cast %33 : vector<8xf32> to vector<1x8xf32>
    %cst_34 = arith.constant 5.120000e+02 : f32
    %35 = vector.broadcast %cst_34 : f32 to vector<1x8xf32>
    %36 = arith.divf %30, %35 : vector<1x8xf32>
    %cst_35 = arith.constant 5.120000e+02 : f32
    %37 = vector.broadcast %cst_35 : f32 to vector<1x8xf32>
    %38 = arith.divf %34, %37 : vector<1x8xf32>
    %39 = arith.mulf %36, %36 : vector<1x8xf32>
    %40 = arith.subf %38, %39 : vector<1x8xf32>
    %cst_36 = arith.constant 9.99999974E-6 : f32
    %41 = vector.broadcast %cst_36 : f32 to vector<1x8xf32>
    %42 = arith.addf %40, %41 : vector<1x8xf32>
    %43 = math.rsqrt %42 : vector<1x8xf32>
    %44 = arith.mulf %43, %3 : vector<1x8xf32>
    %45 = arith.mulf %36, %44 : vector<1x8xf32>
    %46 = arith.subf %4, %45 : vector<1x8xf32>
    %47 = vector.shape_cast %44 : vector<1x8xf32> to vector<1x8xf32>
    %48 = vector.broadcast %47 : vector<1x8xf32> to vector<8x8xf32>
    %cst_37 = arith.constant dense<0.000000e+00> : vector<8x144xf32>
    %49 = tpu.matmul %48, %1, %cst_37 {dimension_numbers = #tpu.dot_dimension_numbers<[1], [0], [0], [1], [0, 0, 1, 1], [], []>} : vector<8x8xf32>, vector<8x144xf32>, vector<8x144xf32> -> vector<8x144xf32>
    %50 = vector.extract_strided_slice %49 {offsets = [0, 0], sizes = [1, 144], strides = [1, 1]} : vector<8x144xf32> to vector<1x144xf32>
    %51 = vector.broadcast %50 : vector<1x144xf32> to vector<36x144xf32>
    %52 = arith.mulf %27, %51 : vector<36x144xf32>
    %53 = vector.shape_cast %46 : vector<1x8xf32> to vector<1x8xf32>
    %54 = vector.broadcast %53 : vector<1x8xf32> to vector<8x8xf32>
    %cst_38 = arith.constant dense<0.000000e+00> : vector<8x144xf32>
    %55 = tpu.matmul %54, %1, %cst_38 {dimension_numbers = #tpu.dot_dimension_numbers<[1], [0], [0], [1], [0, 0, 1, 1], [], []>} : vector<8x8xf32>, vector<8x144xf32>, vector<8x144xf32> -> vector<8x144xf32>
    %56 = vector.extract_strided_slice %55 {offsets = [0, 0], sizes = [1, 144], strides = [1, 1]} : vector<8x144xf32> to vector<1x144xf32>
    %57 = vector.broadcast %56 : vector<1x144xf32> to vector<36x144xf32>
    %58 = arith.addf %52, %57 : vector<36x144xf32>
    %cst_39 = arith.constant 0.000000e+00 : f32
    %59 = vector.broadcast %cst_39 : f32 to vector<36x144xf32>
    %60 = arith.maximumf %58, %59 : vector<36x144xf32>
    %61 = vector.broadcast %2 : vector<36x1xf32> to vector<36x144xf32>
    %62 = arith.mulf %60, %61 : vector<36x144xf32>
    %c0_40 = arith.constant 0 : index
    %c0_41 = arith.constant 0 : index
    %63 = vector.load %arg6[%c0_40, %c0_41] : memref<1x144xf32, #tpu.memory_space<vmem>>, vector<1x144xf32>
    %c0_42 = arith.constant 0 : index
    %c0_43 = arith.constant 0 : index
    %c0_44 = arith.constant 0 : index
    %64 = vector.load %arg2[%c0_42, %c0_43, %c0_44] : memref<2x36x36xf32, #tpu.memory_space<vmem>>, vector<1x36x36xf32>
    %65 = vector.shape_cast %64 : vector<1x36x36xf32> to vector<36x36xf32>
    %cst_45 = arith.constant dense<0.000000e+00> : vector<36x144xf32>
    %66 = tpu.matmul %65, %62, %cst_45 {dimension_numbers = #tpu.dot_dimension_numbers<[1], [0], [0], [1], [0, 0, 1, 1], [], []>} : vector<36x36xf32>, vector<36x144xf32>, vector<36x144xf32> -> vector<36x144xf32>
    %c1_46 = arith.constant 1 : index
    %c0_47 = arith.constant 0 : index
    %c0_48 = arith.constant 0 : index
    %67 = vector.load %arg2[%c1_46, %c0_47, %c0_48] : memref<2x36x36xf32, #tpu.memory_space<vmem>>, vector<1x36x36xf32>
    %68 = vector.shape_cast %67 : vector<1x36x36xf32> to vector<36x36xf32>
    %cst_49 = arith.constant dense<0.000000e+00> : vector<36x144xf32>
    %69 = tpu.matmul %68, %62, %cst_49 {dimension_numbers = #tpu.dot_dimension_numbers<[1], [0], [0], [1], [0, 0, 1, 1], [], []>} : vector<36x36xf32>, vector<36x144xf32>, vector<36x144xf32> -> vector<36x144xf32>
    %c0_50 = arith.constant 0 : index
    %c0_51 = arith.constant 0 : index
    %c0_52 = arith.constant 0 : index
    %70 = vector.load %arg4[%c0_50, %c0_51, %c0_52] : memref<3x144x144xf32, #tpu.memory_space<vmem>>, vector<1x144x144xf32>
    %71 = vector.shape_cast %70 : vector<1x144x144xf32> to vector<144x144xf32>
    %cst_53 = arith.constant dense<0.000000e+00> : vector<36x144xf32>
    %72 = tpu.matmul %66, %71, %cst_53 {dimension_numbers = #tpu.dot_dimension_numbers<[1], [0], [0], [1], [0, 0, 1, 1], [], []>} : vector<36x144xf32>, vector<144x144xf32>, vector<36x144xf32> -> vector<36x144xf32>
    %c1_54 = arith.constant 1 : index
    %c0_55 = arith.constant 0 : index
    %c0_56 = arith.constant 0 : index
    %73 = vector.load %arg4[%c1_54, %c0_55, %c0_56] : memref<3x144x144xf32, #tpu.memory_space<vmem>>, vector<1x144x144xf32>
    %74 = vector.shape_cast %73 : vector<1x144x144xf32> to vector<144x144xf32>
    %cst_57 = arith.constant dense<0.000000e+00> : vector<36x144xf32>
    %75 = tpu.matmul %62, %74, %cst_57 {dimension_numbers = #tpu.dot_dimension_numbers<[1], [0], [0], [1], [0, 0, 1, 1], [], []>} : vector<36x144xf32>, vector<144x144xf32>, vector<36x144xf32> -> vector<36x144xf32>
    %76 = arith.addf %72, %75 : vector<36x144xf32>
    %c2_58 = arith.constant 2 : index
    %c0_59 = arith.constant 0 : index
    %c0_60 = arith.constant 0 : index
    %77 = vector.load %arg4[%c2_58, %c0_59, %c0_60] : memref<3x144x144xf32, #tpu.memory_space<vmem>>, vector<1x144x144xf32>
    %78 = vector.shape_cast %77 : vector<1x144x144xf32> to vector<144x144xf32>
    %cst_61 = arith.constant dense<0.000000e+00> : vector<36x144xf32>
    %79 = tpu.matmul %69, %78, %cst_61 {dimension_numbers = #tpu.dot_dimension_numbers<[1], [0], [0], [1], [0, 0, 1, 1], [], []>} : vector<36x144xf32>, vector<144x144xf32>, vector<36x144xf32> -> vector<36x144xf32>
    %80 = arith.addf %76, %79 : vector<36x144xf32>
    %81 = vector.broadcast %63 : vector<1x144xf32> to vector<36x144xf32>
    %82 = arith.addf %80, %81 : vector<36x144xf32>
    %83 = vector.broadcast %2 : vector<36x1xf32> to vector<36x144xf32>
    %84 = arith.mulf %82, %83 : vector<36x144xf32>
    %cst_62 = arith.constant dense<0.000000e+00> : vector<36x8xf32>
    %85 = tpu.matmul %84, %0, %cst_62 {dimension_numbers = #tpu.dot_dimension_numbers<[1], [0], [0], [1], [0, 0, 1, 1], [], []>} : vector<36x144xf32>, vector<144x8xf32>, vector<36x8xf32> -> vector<36x8xf32>
    %cst_63 = arith.constant dense<0.000000e+00> : vector<8xf32>
    %86 = vector.multi_reduction <add>, %85, %cst_63 [0] : vector<36x8xf32> to vector<8xf32>
    %87 = vector.shape_cast %86 : vector<8xf32> to vector<1x8xf32>
    %88 = arith.mulf %84, %84 : vector<36x144xf32>
    %cst_64 = arith.constant dense<0.000000e+00> : vector<36x8xf32>
    %89 = tpu.matmul %88, %0, %cst_64 {dimension_numbers = #tpu.dot_dimension_numbers<[1], [0], [0], [1], [0, 0, 1, 1], [], []>} : vector<36x144xf32>, vector<144x8xf32>, vector<36x8xf32> -> vector<36x8xf32>
    %cst_65 = arith.constant dense<0.000000e+00> : vector<8xf32>
    %90 = vector.multi_reduction <add>, %89, %cst_65 [0] : vector<36x8xf32> to vector<8xf32>
    %91 = vector.shape_cast %90 : vector<8xf32> to vector<1x8xf32>
    %cst_66 = arith.constant 5.120000e+02 : f32
    %92 = vector.broadcast %cst_66 : f32 to vector<1x8xf32>
    %93 = arith.divf %87, %92 : vector<1x8xf32>
    %cst_67 = arith.constant 5.120000e+02 : f32
    %94 = vector.broadcast %cst_67 : f32 to vector<1x8xf32>
    %95 = arith.divf %91, %94 : vector<1x8xf32>
    %96 = arith.mulf %93, %93 : vector<1x8xf32>
    %97 = arith.subf %95, %96 : vector<1x8xf32>
    %cst_68 = arith.constant 9.99999974E-6 : f32
    %98 = vector.broadcast %cst_68 : f32 to vector<1x8xf32>
    %99 = arith.addf %97, %98 : vector<1x8xf32>
    %100 = math.rsqrt %99 : vector<1x8xf32>
    %101 = arith.mulf %100, %3 : vector<1x8xf32>
    %102 = arith.mulf %93, %101 : vector<1x8xf32>
    %103 = arith.subf %4, %102 : vector<1x8xf32>
    %104 = vector.shape_cast %101 : vector<1x8xf32> to vector<1x8xf32>
    %105 = vector.broadcast %104 : vector<1x8xf32> to vector<8x8xf32>
    %cst_69 = arith.constant dense<0.000000e+00> : vector<8x144xf32>
    %106 = tpu.matmul %105, %1, %cst_69 {dimension_numbers = #tpu.dot_dimension_numbers<[1], [0], [0], [1], [0, 0, 1, 1], [], []>} : vector<8x8xf32>, vector<8x144xf32>, vector<8x144xf32> -> vector<8x144xf32>
    %107 = vector.extract_strided_slice %106 {offsets = [0, 0], sizes = [1, 144], strides = [1, 1]} : vector<8x144xf32> to vector<1x144xf32>
    %108 = vector.broadcast %107 : vector<1x144xf32> to vector<36x144xf32>
    %109 = arith.mulf %84, %108 : vector<36x144xf32>
    %110 = vector.shape_cast %103 : vector<1x8xf32> to vector<1x8xf32>
    %111 = vector.broadcast %110 : vector<1x8xf32> to vector<8x8xf32>
    %cst_70 = arith.constant dense<0.000000e+00> : vector<8x144xf32>
    %112 = tpu.matmul %111, %1, %cst_70 {dimension_numbers = #tpu.dot_dimension_numbers<[1], [0], [0], [1], [0, 0, 1, 1], [], []>} : vector<8x8xf32>, vector<8x144xf32>, vector<8x144xf32> -> vector<8x144xf32>
    %113 = vector.extract_strided_slice %112 {offsets = [0, 0], sizes = [1, 144], strides = [1, 1]} : vector<8x144xf32> to vector<1x144xf32>
    %114 = vector.broadcast %113 : vector<1x144xf32> to vector<36x144xf32>
    %115 = arith.addf %109, %114 : vector<36x144xf32>
    %cst_71 = arith.constant 0.000000e+00 : f32
    %116 = vector.broadcast %cst_71 : f32 to vector<36x144xf32>
    %117 = arith.maximumf %115, %116 : vector<36x144xf32>
    %118 = vector.broadcast %2 : vector<36x1xf32> to vector<36x144xf32>
    %119 = arith.mulf %117, %118 : vector<36x144xf32>
    %c0_72 = arith.constant 0 : index
    %c0_73 = arith.constant 0 : index
    %120 = vector.load %arg12[%c0_72, %c0_73] : memref<36x144xf32, #tpu.memory_space<vmem>>, vector<36x144xf32>
    tpu.vector_store %arg12[%c0_72, %c0_73], %119 {strides = array<i32>} : memref<36x144xf32, #tpu.memory_space<vmem>>, vector<36x144xf32>,
    return
  }
  func.func @transform_0(%arg0: i32) -> (i32, i32) {
    %c0_i32 = arith.constant 0 : i32
    %c0_i32_0 = arith.constant 0 : i32
    %c0_i32_1 = arith.constant 0 : i32
    return %c0_i32, %c0_i32_0 : i32, i32
  }
  func.func @transform_1(%arg0: i32) -> (i32, i32, i32) {
    %c0_i32 = arith.constant 0 : i32
    %c0_i32_0 = arith.constant 0 : i32
    %c0_i32_1 = arith.constant 0 : i32
    %c0_i32_2 = arith.constant 0 : i32
    return %c0_i32, %c0_i32_0, %c0_i32_1 : i32, i32, i32
  }
  func.func @transform_2(%arg0: i32) -> (i32, i32, i32) {
    %c0_i32 = arith.constant 0 : i32
    %c0_i32_0 = arith.constant 0 : i32
    %c0_i32_1 = arith.constant 0 : i32
    %c0_i32_2 = arith.constant 0 : i32
    return %c0_i32, %c0_i32_0, %c0_i32_1 : i32, i32, i32
  }
  func.func @transform_3(%arg0: i32) -> (i32, i32, i32) {
    %c0_i32 = arith.constant 0 : i32
    %c0_i32_0 = arith.constant 0 : i32
    %c0_i32_1 = arith.constant 0 : i32
    %c0_i32_2 = arith.constant 0 : i32
    return %c0_i32, %c0_i32_0, %c0_i32_1 : i32, i32, i32
  }
  func.func @transform_4(%arg0: i32) -> (i32, i32) {
    %c0_i32 = arith.constant 0 : i32
    %c0_i32_0 = arith.constant 0 : i32
    %c0_i32_1 = arith.constant 0 : i32
    return %c0_i32, %c0_i32_0 : i32, i32
  }
  func.func @transform_5(%arg0: i32) -> (i32, i32) {
    %c0_i32 = arith.constant 0 : i32
    %c0_i32_0 = arith.constant 0 : i32
    %c0_i32_1 = arith.constant 0 : i32
    return %c0_i32, %c0_i32_0 : i32, i32
  }
  func.func @transform_6(%arg0: i32) -> (i32, i32) {
    %c0_i32 = arith.constant 0 : i32
    %c0_i32_0 = arith.constant 0 : i32
    %c0_i32_1 = arith.constant 0 : i32
    return %c0_i32, %c0_i32_0 : i32, i32
  }
  func.func @transform_7(%arg0: i32) -> (i32, i32) {
    %c0_i32 = arith.constant 0 : i32
    %c0_i32_0 = arith.constant 0 : i32
    %c0_i32_1 = arith.constant 0 : i32
    return %c0_i32, %c0_i32_0 : i32, i32
  }
  func.func @transform_8(%arg0: i32) -> (i32, i32) {
    %c0_i32 = arith.constant 0 : i32
    %c0_i32_0 = arith.constant 0 : i32
    %c0_i32_1 = arith.constant 0 : i32
    return %c0_i32, %c0_i32_0 : i32, i32
  }
  func.func @transform_9(%arg0: i32) -> (i32, i32) {
    %c0_i32 = arith.constant 0 : i32
    %c0_i32_0 = arith.constant 0 : i32
    %c0_i32_1 = arith.constant 0 : i32
    return %c0_i32, %c0_i32_0 : i32, i32
  }
  func.func @transform_10(%arg0: i32) -> (i32, i32) {
    %c0_i32 = arith.constant 0 : i32
    %c0_i32_0 = arith.constant 0 : i32
    %c0_i32_1 = arith.constant 0 : i32
    return %c0_i32, %c0_i32_0 : i32, i32
  }
  func.func @transform_11(%arg0: i32) -> (i32, i32) {
    %c0_i32 = arith.constant 0 : i32
    %c0_i32_0 = arith.constant 0 : i32
    %c0_i32_1 = arith.constant 0 : i32
    return %c0_i32, %c0_i32_0 : i32, i32
  }
}

</mosaic_0001>

<llo_original>
// kernel: tpu_custom_call.1
$region0: #{tpu_custom_call.1}
  #allocation0 [shape = 'u32[]', space=smem, size = 0x4, offset = 0x4, fixed_abs, tag = 'smem constant byte address 0x4 - core index']
  #allocation1 [shape = 'u32[144,128]{1,0:T(1,128)}', space=vmem, size = 0x12000, scoped, tag = 'internal scratch']
  %s0 = inlined_call_operand.vmem [shape: f32[36,72], index: 0, kind: input, shape index: {}]
  %s1 = inlined_call_operand.vmem [shape: f32[2,36,36], index: 1, kind: input, shape index: {}]
  %s2 = inlined_call_operand.hbm [shape: f32[3,72,144], index: 2, kind: input, shape index: {}]
  %s3 = inlined_call_operand.hbm [shape: f32[3,144,144], index: 3, kind: input, shape index: {}]
  %s4 = inlined_call_operand.vmem [shape: f32[1,144], index: 4, kind: input, shape index: {}]
  %s5 = inlined_call_operand.vmem [shape: f32[1,144], index: 5, kind: input, shape index: {}]
  %s6 = inlined_call_operand.vmem [shape: f32[144,8], index: 6, kind: input, shape index: {}]
  %s7 = inlined_call_operand.vmem [shape: f32[8,144], index: 7, kind: input, shape index: {}]
  %s8 = inlined_call_operand.vmem [shape: f32[36,1], index: 8, kind: input, shape index: {}]
  %s9 = inlined_call_operand.vmem [shape: f32[1,8], index: 9, kind: input, shape index: {}]
  %s10 = inlined_call_operand.vmem [shape: f32[1,8], index: 10, kind: input, shape index: {}]
  %s11 = inlined_call_operand.hbm [shape: f32[36,144], index: 11, kind: output, shape index: {}]
  %s12 = sld [smem:[#allocation0]]
  $region62: #{tpu_custom_call.1} parent=0
    _
  %s14 = ssub.s32 1, %s12
  %s15 = scalar_select 0, %s14, %s12
  $region1: #{tpu_custom_call.1} parent=0
    #allocation2 [shape = 'u8[221184]{0}', space=vmem, size = 0x36000, scoped, tag = 'input window, operand 2, single buffered']
    #allocation3 [shape = 's32[1]{0}', space=sflag, size = 0x4, scoped, tag = 'scoped memory for tpu_custom_call.1']
    #allocation4 [shape = 's32[1]{0}', space=sflag, size = 0x4, scoped, tag = 'scoped memory for tpu_custom_call.1']
    #allocation5 [shape = 'u8[442368]{0}', space=vmem, size = 0x6c000, scoped, tag = 'input window, operand 3, single buffered']
    #allocation6 [shape = 's32[1]{0}', space=sflag, size = 0x4, scoped, tag = 'scoped memory for tpu_custom_call.1']
    #allocation7 [shape = 'u8[40960]{0}', space=vmem, size = 0xa000, scoped, tag = 'output window, operand 0, single buffered']
    %16 = vsyncpa [#allocation3], 0
    %17 = vsyncpa [#allocation6], 0
    %18 = vsyncpa [#allocation4], 0
    // Predicated region
    $region2: #{tpu_custom_call.1} parent=1 // pred_check
      _
    $region3: #{tpu_custom_call.1} parent=1 // pred_check_branch
      %20 = sbr.rel (0) target = $region5
    $region4: #{tpu_custom_call.1} parent=1 // pred_region
      _
    $region5: #{tpu_custom_call.1} parent=1 // pred_fallthru
      _
    // Predicated region
    $region6: #{tpu_custom_call.1} parent=1 // pred_check
      _
    $region7: #{tpu_custom_call.1} parent=1 // pred_check_branch
      %22 = sbr.rel (0) target = $region9
    $region8: #{tpu_custom_call.1} parent=1 // pred_region
      _
    $region9: #{tpu_custom_call.1} parent=1 // pred_fallthru
      _
    // Predicated region
    $region10: #{tpu_custom_call.1} parent=1 // pred_check
      _
    $region11: #{tpu_custom_call.1} parent=1 // pred_check_branch
      %24 = sbr.rel (0) target = $region13
    $region12: #{tpu_custom_call.1} parent=1 // pred_region
      %s26 = ssub.s32 6912, 6912
      %27 = vsyncadd [#allocation3], %s26
      %s28 = sshll.u32 [#allocation2], 4
      %s29 = int_to_ptr.vmem [resolvable:$true] %s28
      %34 = dma.hbm_to_vmem [thread:$0]  %s2, 6912, %s29, [#allocation3], 256, 256, 16
    $region13: #{tpu_custom_call.1} parent=1 // pred_fallthru
      _
    // Predicated region
    $region14: #{tpu_custom_call.1} parent=1 // pred_check
      _
    $region15: #{tpu_custom_call.1} parent=1 // pred_check_branch
      %36 = sbr.rel (0) target = $region17
    $region16: #{tpu_custom_call.1} parent=1 // pred_region
      %s38 = ssub.s32 13824, 13824
      %39 = vsyncadd [#allocation6], %s38
      %s40 = sshll.u32 [#allocation5], 4
      %s41 = int_to_ptr.vmem [resolvable:$true] %s40
      %46 = dma.hbm_to_vmem [thread:$0]  %s3, 13824, %s41, [#allocation6], 256, 256, 16
    $region17: #{tpu_custom_call.1} parent=1 // pred_fallthru
      _
    // Predicated region
    $region18: #{tpu_custom_call.1} parent=1 // pred_check
      _
    $region19: #{tpu_custom_call.1} parent=1 // pred_check_branch
      %48 = sbr.rel (0) target = $region21
    $region20: #{tpu_custom_call.1} parent=1 // pred_region
      _
    $region21: #{tpu_custom_call.1} parent=1 // pred_fallthru
      _
    // Predicated region
    $region22: #{tpu_custom_call.1} parent=1 // pred_check
      _
    $region23: #{tpu_custom_call.1} parent=1 // pred_check_branch
      %50 = sbr.rel (0) target = $region25
    $region24: #{tpu_custom_call.1} parent=1 // pred_region
      _
    $region25: #{tpu_custom_call.1} parent=1 // pred_fallthru
      _
    // Predicated region
    $region26: #{tpu_custom_call.1} parent=1 // pred_check
      _
    $region27: #{tpu_custom_call.1} parent=1 // pred_check_branch
      %52 = sbr.rel (0) target = $region29
    $region28: #{tpu_custom_call.1} parent=1 // pred_region
      _
    $region29: #{tpu_custom_call.1} parent=1 // pred_fallthru
      _
    // Predicated region
    $region30: #{tpu_custom_call.1} parent=1 // pred_check
      _
    $region31: #{tpu_custom_call.1} parent=1 // pred_check_branch
      %54 = sbr.rel (0) target = $region33
    $region32: #{tpu_custom_call.1} parent=1 // pred_region
      _
    $region33: #{tpu_custom_call.1} parent=1 // pred_fallthru
      _
    // Predicated region
    $region34: #{tpu_custom_call.1} parent=1 // pred_check
      _
    $region35: #{tpu_custom_call.1} parent=1 // pred_check_branch
      %56 = sbr.rel (0) target = $region37
    $region36: #{tpu_custom_call.1} parent=1 // pred_region
      _
    $region37: #{tpu_custom_call.1} parent=1 // pred_fallthru
      _
    // Predicated region
    $region38: #{tpu_custom_call.1} parent=1 // pred_check
      _
    $region39: #{tpu_custom_call.1} parent=1 // pred_check_branch
      %58 = sbr.rel (0) target = $region41
    $region40: #{tpu_custom_call.1} parent=1 // pred_region
      _
    $region41: #{tpu_custom_call.1} parent=1 // pred_fallthru
      _
    // Predicated region
    $region42: #{tpu_custom_call.1} parent=1 // pred_check
      _
    $region43: #{tpu_custom_call.1} parent=1 // pred_check_branch
      %60 = sbr.rel (0) target = $region45
    $region44: #{tpu_custom_call.1} parent=1 // pred_region
      _
    $region45: #{tpu_custom_call.1} parent=1 // pred_fallthru
      _
    // Predicated region
    $region46: #{tpu_custom_call.1} parent=1 // pred_check
      _
    $region47: #{tpu_custom_call.1} parent=1 // pred_check_branch
      %62 = sbr.rel (0) target = $region49
    $region48: #{tpu_custom_call.1} parent=1 // pred_region
      %63 = dma.done [#allocation3], 6912
    $region49: #{tpu_custom_call.1} parent=1 // pred_fallthru
      _
    // Predicated region
    $region50: #{tpu_custom_call.1} parent=1 // pred_check
      _
    $region51: #{tpu_custom_call.1} parent=1 // pred_check_branch
      %65 = sbr.rel (0) target = $region53
    $region52: #{tpu_custom_call.1} parent=1 // pred_region
      %66 = dma.done [#allocation6], 13824
    $region53: #{tpu_custom_call.1} parent=1 // pred_fallthru
      _
    %v67 = vld [vmem:[%s6] sm:$0xff]
    %v68 = vld [vmem:[%s6 + $0x8] sm:$0xff]
    %v69 = vld [vmem:[%s6 + $0x10] sm:$0xff]
    %v70 = vld [vmem:[%s6 + $0x18] sm:$0xff]
    %v71 = vld [vmem:[%s6 + $0x20] sm:$0xff]
    %v72 = vld [vmem:[%s6 + $0x28] sm:$0xff]
    %v73 = vld [vmem:[%s6 + $0x30] sm:$0xff]
    %v74 = vld [vmem:[%s6 + $0x38] sm:$0xff]
    %v75 = vld [vmem:[%s6 + $0x40] sm:$0xff]
    %v76 = vld [vmem:[%s6 + $0x48] sm:$0xff]
    %v77 = vld [vmem:[%s6 + $0x50] sm:$0xff]
    %v78 = vld [vmem:[%s6 + $0x58] sm:$0xff]
    %v79 = vld [vmem:[%s6 + $0x60] sm:$0xff]
    %v80 = vld [vmem:[%s6 + $0x68] sm:$0xff]
    %v81 = vld [vmem:[%s6 + $0x70] sm:$0xff]
    %v82 = vld [vmem:[%s6 + $0x78] sm:$0xff]
    %v83 = vld [vmem:[%s6 + $0x80] sm:$0xff]
    %v84 = vld [vmem:[%s6 + $0x88] sm:$0xff]
    %v85 = vld [vmem:[%s7] sm:$0xff]
    %v86 = vld [vmem:[%s7 + $0x8] sm:$0xff]
    %v87 = vld [vmem:[%s8] sm:$0xff]
    %v88 = vld [vmem:[%s8 + $0x8] sm:$0xff]
    %v89 = vld [vmem:[%s8 + $0x10] sm:$0xff]
    %v90 = vld [vmem:[%s8 + $0x18] sm:$0xff]
    %v91 = vld [vmem:[%s8 + $0x20] sm:$0xf]
    %v92 = vld [vmem:[%s9] sm:$0x1]
    %v93 = vld [vmem:[%s10] sm:$0x1]
    %v94 = vld [vmem:[%s0] sm:$0xff]
    %v95 = vld [vmem:[%s0 + $0x8] sm:$0xff]
    %v96 = vld [vmem:[%s0 + $0x10] sm:$0xff]
    %v97 = vld [vmem:[%s0 + $0x18] sm:$0xff]
    %v98 = vld [vmem:[%s0 + $0x20] sm:$0xf]
    %v99 = vld [vmem:[%s4] sm:$0x3]
    %v100 = vld [vmem:[%s1] sm:$0xff]
    %v101 = vld [vmem:[%s1 + $0x8] sm:$0xff]
    %v102 = vld [vmem:[%s1 + $0x10] sm:$0xff]
    %v103 = vld [vmem:[%s1 + $0x18] sm:$0xff]
    %v104 = vld [vmem:[%s1 + $0x20] sm:$0xf]
    %vm105 = vcmask 293888
    %v107 = vsel %vm105, %v100, 0
    %v110 = vsel %vm105, %v101, 0
    %v113 = vsel %vm105, %v102, 0
    %v116 = vsel %vm105, %v103, 0
    %v119 = vsel %vm105, %v104, 0
    %vm121 = vcmask 1043456
    %v123 = vsel %vm121, %v98, 0
    %125 = vmatprep.subr.mxu0 0.0
    %126 = vmatpush1.msra.mxu0 %v94
    %127 = vmatprep.subr.mxu0 0.0
    %128 = vmatpush1.msra.mxu0 %v95
    %129 = vmatprep.subr.mxu0 0.0
    %130 = vmatpush1.msra.mxu0 %v96
    %131 = vmatprep.subr.mxu0 0.0
    %132 = vmatpush1.msra.mxu0 %v97
    %133 = vmatprep.subr.mxu0 0.0
    %134 = vmatpush1.msra.mxu0 %v123
    %135 = vmatprep.subr.mxu0 0.0
    %136 = vmatpush1.msra.mxu0 0.0
    %137 = vmatprep.subr.mxu0 0.0
    %138 = vmatpush1.msra.mxu0 0.0
    %139 = vmatprep.subr.mxu0 0.0
    %140 = vmatpush1.msra.mxu0 0.0
    %141 = vmatprep.subr.mxu0 0.0
    %142 = vmatpush1.msra.mxu0 0.0
    %143 = vmatprep.subr.mxu0 0.0
    %144 = vmatpush1.msra.mxu0 0.0
    %145 = vmatprep.subr.mxu0 0.0
    %146 = vmatpush1.msra.mxu0 0.0
    %147 = vmatprep.subr.mxu0 0.0
    %148 = vmatpush1.msra.mxu0 0.0
    %149 = vmatprep.subr.mxu0 0.0
    %150 = vmatpush1.msra.mxu0 0.0
    %151 = vmatprep.subr.mxu0 0.0
    %152 = vmatpush1.msra.mxu0 0.0
    %153 = vmatprep.subr.mxu0 0.0
    %154 = vmatpush1.msra.mxu0 0.0
    %155 = vmatprep.subr.mxu0 0.0
    %156 = vmatpush1.msra.mxu0 0.0
    %157 = vmatprep.subr.mxu0 0.0
    %158 = vmatpush1.msra.mxu0 0.0
    %159 = vmatprep.subr.mxu0 0.0
    %160 = vmatpush1.msra.mxu0 0.0
    %161 = vmatprep.subr.mxu0 0.0
    %162 = vmatpush1.msra.mxu0 0.0
    %163 = vmatprep.subr.mxu0 0.0
    %164 = vmatpush1.msra.mxu0 0.0
    %165 = vmatprep.subr.mxu0 0.0
    %166 = vmatpush1.msra.mxu0 0.0
    %167 = vmatprep.subr.mxu0 0.0
    %168 = vmatpush1.msra.mxu0 0.0
    %169 = vmatprep.subr.mxu0 0.0
    %170 = vmatpush1.msra.mxu0 0.0
    %171 = vmatprep.subr.mxu0 0.0
    %172 = vmatpush1.msra.mxu0 0.0
    %173 = vmatprep.subr.mxu0 0.0
    %174 = vmatpush1.msra.mxu0 0.0
    %175 = vmatprep.subr.mxu0 0.0
    %176 = vmatpush1.msra.mxu0 0.0
    %177 = vmatprep.subr.mxu0 0.0
    %178 = vmatpush1.msra.mxu0 0.0
    %179 = vmatprep.subr.mxu0 0.0
    %180 = vmatpush1.msra.mxu0 0.0
    %181 = vmatprep.subr.mxu0 0.0
    %182 = vmatpush1.msra.mxu0 0.0
    %183 = vmatprep.subr.mxu0 0.0
    %184 = vmatpush1.msra.mxu0 0.0
    %185 = vmatprep.subr.mxu0 0.0
    %186 = vmatpush1.msra.mxu0 0.0
    %187 = vmatprep.subr.mxu0 0.0
    %188 = vmatpush1.msra.mxu0 0.0
    %189 = vmatprep.mubr.f32.mxu0 0.0
    %190 = vmatmul.mubr.f32.gmra.mrb[0].mxu0 %v107
    %v191 = vpop.f32.mrb[0].mxu0
    %v192 = vadd.f32 0.0, %v191
    %v193 = vpop.f32.mrb[0].mxu0
    %194 = vmatprep.mubr.f32.mxu0 0.0
    %195 = vmatmul.mubr.f32.gmra.mrb[0].mxu0 %v110
    %v196 = vpop.f32.mrb[0].mxu0
    %v197 = vadd.f32 0.0, %v196
    %v198 = vpop.f32.mrb[0].mxu0
    %199 = vmatprep.mubr.f32.mxu0 0.0
    %200 = vmatmul.mubr.f32.gmra.mrb[0].mxu0 %v113
    %v201 = vpop.f32.mrb[0].mxu0
    %v202 = vadd.f32 0.0, %v201
    %v203 = vpop.f32.mrb[0].mxu0
    %204 = vmatprep.mubr.f32.mxu0 0.0
    %205 = vmatmul.mubr.f32.gmra.mrb[0].mxu0 %v116
    %v206 = vpop.f32.mrb[0].mxu0
    %v207 = vadd.f32 0.0, %v206
    %v208 = vpop.f32.mrb[0].mxu0
    %209 = vmatprep.mubr.f32.mxu0 0.0
    %210 = vmatmul.mubr.f32.gmra.mrb[0].mxu0 %v119
    %v211 = vpop.f32.mrb[0].mxu0
    %v212 = vadd.f32 0.0, %v211
    %v213 = vpop.f32.mrb[0].mxu0
    %214 = vdwg.mxu0
    %s215 = scalar_lea.vmem %s1, 40
    %v216 = vld [vmem:[%s215] sm:$0xff]
    %v217 = vld [vmem:[%s215 + $0x8] sm:$0xff]
    %v218 = vld [vmem:[%s215 + $0x10] sm:$0xff]
    %v219 = vld [vmem:[%s215 + $0x18] sm:$0xff]
    %v220 = vld [vmem:[%s215 + $0x20] sm:$0xf]
    %v222 = vsel %vm105, %v216, 0
    %v225 = vsel %vm105, %v217, 0
    %v228 = vsel %vm105, %v218, 0
    %v231 = vsel %vm105, %v219, 0
    %v234 = vsel %vm105, %v220, 0
    %236 = vmatprep.subr.mxu0 0.0
    %237 = vmatpush1.msra.mxu0 %v94
    %238 = vmatprep.subr.mxu0 0.0
    %239 = vmatpush1.msra.mxu0 %v95
    %240 = vmatprep.subr.mxu0 0.0
    %241 = vmatpush1.msra.mxu0 %v96
    %242 = vmatprep.subr.mxu0 0.0
    %243 = vmatpush1.msra.mxu0 %v97
    %244 = vmatprep.subr.mxu0 0.0
    %245 = vmatpush1.msra.mxu0 %v123
    %246 = vmatprep.subr.mxu0 0.0
    %247 = vmatpush1.msra.mxu0 0.0
    %248 = vmatprep.subr.mxu0 0.0
    %249 = vmatpush1.msra.mxu0 0.0
    %250 = vmatprep.subr.mxu0 0.0
    %251 = vmatpush1.msra.mxu0 0.0
    %252 = vmatprep.subr.mxu0 0.0
    %253 = vmatpush1.msra.mxu0 0.0
    %254 = vmatprep.subr.mxu0 0.0
    %255 = vmatpush1.msra.mxu0 0.0
    %256 = vmatprep.subr.mxu0 0.0
    %257 = vmatpush1.msra.mxu0 0.0
    %258 = vmatprep.subr.mxu0 0.0
    %259 = vmatpush1.msra.mxu0 0.0
    %260 = vmatprep.subr.mxu0 0.0
    %261 = vmatpush1.msra.mxu0 0.0
    %262 = vmatprep.subr.mxu0 0.0
    %263 = vmatpush1.msra.mxu0 0.0
    %264 = vmatprep.subr.mxu0 0.0
    %265 = vmatpush1.msra.mxu0 0.0
    %266 = vmatprep.subr.mxu0 0.0
    %267 = vmatpush1.msra.mxu0 0.0
    %268 = vmatprep.subr.mxu0 0.0
    %269 = vmatpush1.msra.mxu0 0.0
    %270 = vmatprep.subr.mxu0 0.0
    %271 = vmatpush1.msra.mxu0 0.0
    %272 = vmatprep.subr.mxu0 0.0
    %273 = vmatpush1.msra.mxu0 0.0
    %274 = vmatprep.subr.mxu0 0.0
    %275 = vmatpush1.msra.mxu0 0.0
    %276 = vmatprep.subr.mxu0 0.0
    %277 = vmatpush1.msra.mxu0 0.0
    %278 = vmatprep.subr.mxu0 0.0
    %279 = vmatpush1.msra.mxu0 0.0
    %280 = vmatprep.subr.mxu0 0.0
    %281 = vmatpush1.msra.mxu0 0.0
    %282 = vmatprep.subr.mxu0 0.0
    %283 = vmatpush1.msra.mxu0 0.0
    %284 = vmatprep.subr.mxu0 0.0
    %285 = vmatpush1.msra.mxu0 0.0
    %286 = vmatprep.subr.mxu0 0.0
    %287 = vmatpush1.msra.mxu0 0.0
    %288 = vmatprep.subr.mxu0 0.0
    %289 = vmatpush1.msra.mxu0 0.0
    %290 = vmatprep.subr.mxu0 0.0
    %291 = vmatpush1.msra.mxu0 0.0
    %292 = vmatprep.subr.mxu0 0.0
    %293 = vmatpush1.msra.mxu0 0.0
    %294 = vmatprep.subr.mxu0 0.0
    %295 = vmatpush1.msra.mxu0 0.0
    %296 = vmatprep.subr.mxu0 0.0
    %297 = vmatpush1.msra.mxu0 0.0
    %298 = vmatprep.subr.mxu0 0.0
    %299 = vmatpush1.msra.mxu0 0.0
    %300 = vmatprep.mubr.f32.mxu0 0.0
    %301 = vmatmul.mubr.f32.gmra.mrb[0].mxu0 %v222
    %v302 = vpop.f32.mrb[0].mxu0
    %v303 = vadd.f32 0.0, %v302
    %v304 = vpop.f32.mrb[0].mxu0
    %305 = vmatprep.mubr.f32.mxu0 0.0
    %306 = vmatmul.mubr.f32.gmra.mrb[0].mxu0 %v225
    %v307 = vpop.f32.mrb[0].mxu0
    %v308 = vadd.f32 0.0, %v307
    %v309 = vpop.f32.mrb[0].mxu0
    %310 = vmatprep.mubr.f32.mxu0 0.0
    %311 = vmatmul.mubr.f32.gmra.mrb[0].mxu0 %v228
    %v312 = vpop.f32.mrb[0].mxu0
    %v313 = vadd.f32 0.0, %v312
    %v314 = vpop.f32.mrb[0].mxu0
    %315 = vmatprep.mubr.f32.mxu0 0.0
    %316 = vmatmul.mubr.f32.gmra.mrb[0].mxu0 %v231
    %v317 = vpop.f32.mrb[0].mxu0
    %v318 = vadd.f32 0.0, %v317
    %v319 = vpop.f32.mrb[0].mxu0
    %320 = vmatprep.mubr.f32.mxu0 0.0
    %321 = vmatmul.mubr.f32.gmra.mrb[0].mxu0 %v234
    %v322 = vpop.f32.mrb[0].mxu0
    %v323 = vadd.f32 0.0, %v322
    %v324 = vpop.f32.mrb[0].mxu0
    %325 = vdwg.mxu0
    %v326 = vld [vmem:[#allocation2] sm:$0xff]
    %v327 = vld [vmem:[#allocation2 + $0x8] sm:$0xff]
    %v328 = vld [vmem:[#allocation2 + $0x10] sm:$0xff]
    %v329 = vld [vmem:[#allocation2 + $0x18] sm:$0xff]
    %v330 = vld [vmem:[#allocation2 + $0x20] sm:$0xff]
    %v331 = vld [vmem:[#allocation2 + $0x28] sm:$0xff]
    %v332 = vld [vmem:[#allocation2 + $0x30] sm:$0xff]
    %v333 = vld [vmem:[#allocation2 + $0x38] sm:$0xff]
    %v334 = vld [vmem:[#allocation2 + $0x40] sm:$0xff]
    %v335 = vld [vmem:[#allocation2 + $0x48] sm:$0xff]
    %v336 = vld [vmem:[#allocation2 + $0x50] sm:$0xff]
    %v337 = vld [vmem:[#allocation2 + $0x58] sm:$0xff]
    %v338 = vld [vmem:[#allocation2 + $0x60] sm:$0xff]
    %v339 = vld [vmem:[#allocation2 + $0x68] sm:$0xff]
    %v340 = vld [vmem:[#allocation2 + $0x70] sm:$0xff]
    %v341 = vld [vmem:[#allocation2 + $0x78] sm:$0xff]
    %v342 = vld [vmem:[#allocation2 + $0x80] sm:$0xff]
    %v343 = vld [vmem:[#allocation2 + $0x88] sm:$0xff]
    %s344 = scalar_lea.vmem [#allocation2], 144
    %v345 = vld [vmem:[%s344] sm:$0xff]
    %v346 = vld [vmem:[%s344 + $0x8] sm:$0xff]
    %v347 = vld [vmem:[%s344 + $0x10] sm:$0xff]
    %v348 = vld [vmem:[%s344 + $0x18] sm:$0xff]
    %v349 = vld [vmem:[%s344 + $0x20] sm:$0xff]
    %v350 = vld [vmem:[%s344 + $0x28] sm:$0xff]
    %v351 = vld [vmem:[%s344 + $0x30] sm:$0xff]
    %v352 = vld [vmem:[%s344 + $0x38] sm:$0xff]
    %v353 = vld [vmem:[%s344 + $0x40] sm:$0xff]
    %v354 = vld [vmem:[%s344 + $0x48] sm:$0xff]
    %v355 = vld [vmem:[%s344 + $0x50] sm:$0xff]
    %v356 = vld [vmem:[%s344 + $0x58] sm:$0xff]
    %v357 = vld [vmem:[%s344 + $0x60] sm:$0xff]
    %v358 = vld [vmem:[%s344 + $0x68] sm:$0xff]
    %v359 = vld [vmem:[%s344 + $0x70] sm:$0xff]
    %v360 = vld [vmem:[%s344 + $0x78] sm:$0xff]
    %v361 = vld [vmem:[%s344 + $0x80] sm:$0xff]
    %v362 = vld [vmem:[%s344 + $0x88] sm:$0xff]
    %vm363 = vcmask 588800
    %v365 = vsel %vm363, %v94, 0
    %v368 = vsel %vm363, %v95, 0
    %v371 = vsel %vm363, %v96, 0
    %v374 = vsel %vm363, %v97, 0
    %v376 = vsel %vm363, %v98, 0
    %378 = vmatprep.subr.mxu0 %v346
    %379 = vmatpush1.msra.mxu0 %v345
    %380 = vmatprep.subr.mxu0 %v348
    %381 = vmatpush1.msra.mxu0 %v347
    %382 = vmatprep.subr.mxu0 %v350
    %383 = vmatpush1.msra.mxu0 %v349
    %384 = vmatprep.subr.mxu0 %v352
    %385 = vmatpush1.msra.mxu0 %v351
    %386 = vmatprep.subr.mxu0 %v354
    %387 = vmatpush1.msra.mxu0 %v353
    %388 = vmatprep.subr.mxu0 %v356
    %389 = vmatpush1.msra.mxu0 %v355
    %390 = vmatprep.subr.mxu0 %v358
    %391 = vmatpush1.msra.mxu0 %v357
    %392 = vmatprep.subr.mxu0 %v360
    %393 = vmatpush1.msra.mxu0 %v359
    %394 = vmatprep.subr.mxu0 %v362
    %395 = vmatpush1.msra.mxu0 %v361
    %396 = vmatprep.subr.mxu0 0.0
    %397 = vmatpush1.msra.mxu0 0.0
    %398 = vmatprep.subr.mxu0 0.0
    %399 = vmatpush1.msra.mxu0 0.0
    %400 = vmatprep.subr.mxu0 0.0
    %401 = vmatpush1.msra.mxu0 0.0
    %402 = vmatprep.subr.mxu0 0.0
    %403 = vmatpush1.msra.mxu0 0.0
    %404 = vmatprep.subr.mxu0 0.0
    %405 = vmatpush1.msra.mxu0 0.0
    %406 = vmatprep.subr.mxu0 0.0
    %407 = vmatpush1.msra.mxu0 0.0
    %408 = vmatprep.subr.mxu0 0.0
    %409 = vmatpush1.msra.mxu0 0.0
    %410 = vmatprep.subr.mxu0 0.0
    %411 = vmatpush1.msra.mxu0 0.0
    %412 = vmatprep.subr.mxu0 0.0
    %413 = vmatpush1.msra.mxu0 0.0
    %414 = vmatprep.subr.mxu0 0.0
    %415 = vmatpush1.msra.mxu0 0.0
    %416 = vmatprep.subr.mxu0 0.0
    %417 = vmatpush1.msra.mxu0 0.0
    %418 = vmatprep.subr.mxu0 0.0
    %419 = vmatpush1.msra.mxu0 0.0
    %420 = vmatprep.subr.mxu0 0.0
    %421 = vmatpush1.msra.mxu0 0.0
    %422 = vmatprep.subr.mxu0 0.0
    %423 = vmatpush1.msra.mxu0 0.0
    %424 = vmatprep.subr.mxu0 0.0
    %425 = vmatpush1.msra.mxu0 0.0
    %426 = vmatprep.subr.mxu0 0.0
    %427 = vmatpush1.msra.mxu0 0.0
    %428 = vmatprep.subr.mxu0 0.0
    %429 = vmatpush1.msra.mxu0 0.0
    %430 = vmatprep.subr.mxu0 0.0
    %431 = vmatpush1.msra.mxu0 0.0
    %432 = vmatprep.subr.mxu0 0.0
    %433 = vmatpush1.msra.mxu0 0.0
    %434 = vmatprep.subr.mxu0 0.0
    %435 = vmatpush1.msra.mxu0 0.0
    %436 = vmatprep.subr.mxu0 0.0
    %437 = vmatpush1.msra.mxu0 0.0
    %438 = vmatprep.subr.mxu0 0.0
    %439 = vmatpush1.msra.mxu0 0.0
    %440 = vmatprep.subr.mxu0 0.0
    %441 = vmatpush1.msra.mxu0 0.0
    %442 = vmatprep.mubr.f32.mxu0 0.0
    %443 = vmatmul.mubr.f32.gmra.mrb[0].mxu0 %v365
    %v444 = vpop.f32.mrb[0].mxu0
    %v445 = vadd.f32 0.0, %v444
    %v446 = vpop.f32.mrb[0].mxu0
    %v447 = vadd.f32 0.0, %v446
    %448 = vmatprep.mubr.f32.mxu0 0.0
    %449 = vmatmul.mubr.f32.gmra.mrb[0].mxu0 %v368
    %v450 = vpop.f32.mrb[0].mxu0
    %v451 = vadd.f32 0.0, %v450
    %v452 = vpop.f32.mrb[0].mxu0
    %v453 = vadd.f32 0.0, %v452
    %454 = vmatprep.mubr.f32.mxu0 0.0
    %455 = vmatmul.mubr.f32.gmra.mrb[0].mxu0 %v371
    %v456 = vpop.f32.mrb[0].mxu0
    %v457 = vadd.f32 0.0, %v456
    %v458 = vpop.f32.mrb[0].mxu0
    %v459 = vadd.f32 0.0, %v458
    %460 = vmatprep.mubr.f32.mxu0 0.0
    %461 = vmatmul.mubr.f32.gmra.mrb[0].mxu0 %v374
    %v462 = vpop.f32.mrb[0].mxu0
    %v463 = vadd.f32 0.0, %v462
    %v464 = vpop.f32.mrb[0].mxu0
    %v465 = vadd.f32 0.0, %v464
    %466 = vmatprep.mubr.f32.mxu0 0.0
    %467 = vmatmul.mubr.f32.gmra.mrb[0].mxu0 %v376
    %v468 = vpop.f32.mrb[0].mxu0
    %v469 = vadd.f32 0.0, %v468
    %v470 = vpop.f32.mrb[0].mxu0
    %v471 = vadd.f32 0.0, %v470
    %472 = vdwg.mxu0
    %v474 = vsel %vm363, %v192, 0
    %v477 = vsel %vm363, %v197, 0
    %v480 = vsel %vm363, %v202, 0
    %v483 = vsel %vm363, %v207, 0
    %v486 = vsel %vm363, %v212, 0
    %488 = vmatprep.subr.mxu0 %v327
    %489 = vmatpush1.msra.mxu0 %v326
    %490 = vmatprep.subr.mxu0 %v329
    %491 = vmatpush1.msra.mxu0 %v328
    %492 = vmatprep.subr.mxu0 %v331
    %493 = vmatpush1.msra.mxu0 %v330
    %494 = vmatprep.subr.mxu0 %v333
    %495 = vmatpush1.msra.mxu0 %v332
    %496 = vmatprep.subr.mxu0 %v335
    %497 = vmatpush1.msra.mxu0 %v334
    %498 = vmatprep.subr.mxu0 %v337
    %499 = vmatpush1.msra.mxu0 %v336
    %500 = vmatprep.subr.mxu0 %v339
    %501 = vmatpush1.msra.mxu0 %v338
    %502 = vmatprep.subr.mxu0 %v341
    %503 = vmatpush1.msra.mxu0 %v340
    %504 = vmatprep.subr.mxu0 %v343
    %505 = vmatpush1.msra.mxu0 %v342
    %506 = vmatprep.subr.mxu0 0.0
    %507 = vmatpush1.msra.mxu0 0.0
    %508 = vmatprep.subr.mxu0 0.0
    %509 = vmatpush1.msra.mxu0 0.0
    %510 = vmatprep.subr.mxu0 0.0
    %511 = vmatpush1.msra.mxu0 0.0
    %512 = vmatprep.subr.mxu0 0.0
    %513 = vmatpush1.msra.mxu0 0.0
    %514 = vmatprep.subr.mxu0 0.0
    %515 = vmatpush1.msra.mxu0 0.0
    %516 = vmatprep.subr.mxu0 0.0
    %517 = vmatpush1.msra.mxu0 0.0
    %518 = vmatprep.subr.mxu0 0.0
    %519 = vmatpush1.msra.mxu0 0.0
    %520 = vmatprep.subr.mxu0 0.0
    %521 = vmatpush1.msra.mxu0 0.0
    %522 = vmatprep.subr.mxu0 0.0
    %523 = vmatpush1.msra.mxu0 0.0
    %524 = vmatprep.subr.mxu0 0.0
    %525 = vmatpush1.msra.mxu0 0.0
    %526 = vmatprep.subr.mxu0 0.0
    %527 = vmatpush1.msra.mxu0 0.0
    %528 = vmatprep.subr.mxu0 0.0
    %529 = vmatpush1.msra.mxu0 0.0
    %530 = vmatprep.subr.mxu0 0.0
    %531 = vmatpush1.msra.mxu0 0.0
    %532 = vmatprep.subr.mxu0 0.0
    %533 = vmatpush1.msra.mxu0 0.0
    %534 = vmatprep.subr.mxu0 0.0
    %535 = vmatpush1.msra.mxu0 0.0
    %536 = vmatprep.subr.mxu0 0.0
    %537 = vmatpush1.msra.mxu0 0.0
    %538 = vmatprep.subr.mxu0 0.0
    %539 = vmatpush1.msra.mxu0 0.0
    %540 = vmatprep.subr.mxu0 0.0
    %541 = vmatpush1.msra.mxu0 0.0
    %542 = vmatprep.subr.mxu0 0.0
    %543 = vmatpush1.msra.mxu0 0.0
    %544 = vmatprep.subr.mxu0 0.0
    %545 = vmatpush1.msra.mxu0 0.0
    %546 = vmatprep.subr.mxu0 0.0
    %547 = vmatpush1.msra.mxu0 0.0
    %548 = vmatprep.subr.mxu0 0.0
    %549 = vmatpush1.msra.mxu0 0.0
    %550 = vmatprep.subr.mxu0 0.0
    %551 = vmatpush1.msra.mxu0 0.0
    %552 = vmatprep.mubr.f32.mxu0 0.0
    %553 = vmatmul.mubr.f32.gmra.mrb[0].mxu0 %v474
    %v554 = vpop.f32.mrb[0].mxu0
    %v555 = vadd.f32 %v445, %v554
    %v556 = vpop.f32.mrb[0].mxu0
    %v557 = vadd.f32 %v447, %v556
    %558 = vmatprep.mubr.f32.mxu0 0.0
    %559 = vmatmul.mubr.f32.gmra.mrb[0].mxu0 %v477
    %v560 = vpop.f32.mrb[0].mxu0
    %v561 = vadd.f32 %v451, %v560
    %v562 = vpop.f32.mrb[0].mxu0
    %v563 = vadd.f32 %v453, %v562
    %564 = vmatprep.mubr.f32.mxu0 0.0
    %565 = vmatmul.mubr.f32.gmra.mrb[0].mxu0 %v480
    %v566 = vpop.f32.mrb[0].mxu0
    %v567 = vadd.f32 %v457, %v566
    %v568 = vpop.f32.mrb[0].mxu0
    %v569 = vadd.f32 %v459, %v568
    %570 = vmatprep.mubr.f32.mxu0 0.0
    %571 = vmatmul.mubr.f32.gmra.mrb[0].mxu0 %v483
    %v572 = vpop.f32.mrb[0].mxu0
    %v573 = vadd.f32 %v463, %v572
    %v574 = vpop.f32.mrb[0].mxu0
    %v575 = vadd.f32 %v465, %v574
    %576 = vmatprep.mubr.f32.mxu0 0.0
    %577 = vmatmul.mubr.f32.gmra.mrb[0].mxu0 %v486
    %v578 = vpop.f32.mrb[0].mxu0
    %v579 = vadd.f32 %v469, %v578
    %v580 = vpop.f32.mrb[0].mxu0
    %v581 = vadd.f32 %v471, %v580
    %582 = vdwg.mxu0
    %s583 = scalar_lea.vmem [#allocation2], 288
    %v584 = vld [vmem:[%s583] sm:$0xff]
    %v585 = vld [vmem:[%s583 + $0x8] sm:$0xff]
    %v586 = vld [vmem:[%s583 + $0x10] sm:$0xff]
    %v587 = vld [vmem:[%s583 + $0x18] sm:$0xff]
    %v588 = vld [vmem:[%s583 + $0x20] sm:$0xff]
    %v589 = vld [vmem:[%s583 + $0x28] sm:$0xff]
    %v590 = vld [vmem:[%s583 + $0x30] sm:$0xff]
    %v591 = vld [vmem:[%s583 + $0x38] sm:$0xff]
    %v592 = vld [vmem:[%s583 + $0x40] sm:$0xff]
    %v593 = vld [vmem:[%s583 + $0x48] sm:$0xff]
    %v594 = vld [vmem:[%s583 + $0x50] sm:$0xff]
    %v595 = vld [vmem:[%s583 + $0x58] sm:$0xff]
    %v596 = vld [vmem:[%s583 + $0x60] sm:$0xff]
    %v597 = vld [vmem:[%s583 + $0x68] sm:$0xff]
    %v598 = vld [vmem:[%s583 + $0x70] sm:$0xff]
    %v599 = vld [vmem:[%s583 + $0x78] sm:$0xff]
    %v600 = vld [vmem:[%s583 + $0x80] sm:$0xff]
    %v601 = vld [vmem:[%s583 + $0x88] sm:$0xff]
    %v603 = vsel %vm363, %v303, 0
    %v606 = vsel %vm363, %v308, 0
    %v609 = vsel %vm363, %v313, 0
    %v612 = vsel %vm363, %v318, 0
    %v615 = vsel %vm363, %v323, 0
    %617 = vmatprep.subr.mxu0 %v585
    %618 = vmatpush1.msra.mxu0 %v584
    %619 = vmatprep.subr.mxu0 %v587
    %620 = vmatpush1.msra.mxu0 %v586
    %621 = vmatprep.subr.mxu0 %v589
    %622 = vmatpush1.msra.mxu0 %v588
    %623 = vmatprep.subr.mxu0 %v591
    %624 = vmatpush1.msra.mxu0 %v590
    %625 = vmatprep.subr.mxu0 %v593
    %626 = vmatpush1.msra.mxu0 %v592
    %627 = vmatprep.subr.mxu0 %v595
    %628 = vmatpush1.msra.mxu0 %v594
    %629 = vmatprep.subr.mxu0 %v597
    %630 = vmatpush1.msra.mxu0 %v596
    %631 = vmatprep.subr.mxu0 %v599
    %632 = vmatpush1.msra.mxu0 %v598
    %633 = vmatprep.subr.mxu0 %v601
    %634 = vmatpush1.msra.mxu0 %v600
    %635 = vmatprep.subr.mxu0 0.0
    %636 = vmatpush1.msra.mxu0 0.0
    %637 = vmatprep.subr.mxu0 0.0
    %638 = vmatpush1.msra.mxu0 0.0
    %639 = vmatprep.subr.mxu0 0.0
    %640 = vmatpush1.msra.mxu0 0.0
    %641 = vmatprep.subr.mxu0 0.0
    %642 = vmatpush1.msra.mxu0 0.0
    %643 = vmatprep.subr.mxu0 0.0
    %644 = vmatpush1.msra.mxu0 0.0
    %645 = vmatprep.subr.mxu0 0.0
    %646 = vmatpush1.msra.mxu0 0.0
    %647 = vmatprep.subr.mxu0 0.0
    %648 = vmatpush1.msra.mxu0 0.0
    %649 = vmatprep.subr.mxu0 0.0
    %650 = vmatpush1.msra.mxu0 0.0
    %651 = vmatprep.subr.mxu0 0.0
    %652 = vmatpush1.msra.mxu0 0.0
    %653 = vmatprep.subr.mxu0 0.0
    %654 = vmatpush1.msra.mxu0 0.0
    %655 = vmatprep.subr.mxu0 0.0
    %656 = vmatpush1.msra.mxu0 0.0
    %657 = vmatprep.subr.mxu0 0.0
    %658 = vmatpush1.msra.mxu0 0.0
    %659 = vmatprep.subr.mxu0 0.0
    %660 = vmatpush1.msra.mxu0 0.0
    %661 = vmatprep.subr.mxu0 0.0
    %662 = vmatpush1.msra.mxu0 0.0
    %663 = vmatprep.subr.mxu0 0.0
    %664 = vmatpush1.msra.mxu0 0.0
    %665 = vmatprep.subr.mxu0 0.0
    %666 = vmatpush1.msra.mxu0 0.0
    %667 = vmatprep.subr.mxu0 0.0
    %668 = vmatpush1.msra.mxu0 0.0
    %669 = vmatprep.subr.mxu0 0.0
    %670 = vmatpush1.msra.mxu0 0.0
    %671 = vmatprep.subr.mxu0 0.0
    %672 = vmatpush1.msra.mxu0 0.0
    %673 = vmatprep.subr.mxu0 0.0
    %674 = vmatpush1.msra.mxu0 0.0
    %675 = vmatprep.subr.mxu0 0.0
    %676 = vmatpush1.msra.mxu0 0.0
    %677 = vmatprep.subr.mxu0 0.0
    %678 = vmatpush1.msra.mxu0 0.0
    %679 = vmatprep.subr.mxu0 0.0
    %680 = vmatpush1.msra.mxu0 0.0
    %681 = vmatprep.mubr.f32.mxu0 0.0
    %682 = vmatmul.mubr.f32.gmra.mrb[0].mxu0 %v603
    %v683 = vpop.f32.mrb[0].mxu0
    %v684 = vadd.f32 0.0, %v683
    %v685 = vpop.f32.mrb[0].mxu0
    %v686 = vadd.f32 0.0, %v685
    %687 = vmatprep.mubr.f32.mxu0 0.0
    %688 = vmatmul.mubr.f32.gmra.mrb[0].mxu0 %v606
    %v689 = vpop.f32.mrb[0].mxu0
    %v690 = vadd.f32 0.0, %v689
    %v691 = vpop.f32.mrb[0].mxu0
    %v692 = vadd.f32 0.0, %v691
    %693 = vmatprep.mubr.f32.mxu0 0.0
    %694 = vmatmul.mubr.f32.gmra.mrb[0].mxu0 %v609
    %v695 = vpop.f32.mrb[0].mxu0
    %v696 = vadd.f32 0.0, %v695
    %v697 = vpop.f32.mrb[0].mxu0
    %v698 = vadd.f32 0.0, %v697
    %699 = vmatprep.mubr.f32.mxu0 0.0
    %700 = vmatmul.mubr.f32.gmra.mrb[0].mxu0 %v612
    %v701 = vpop.f32.mrb[0].mxu0
    %v702 = vadd.f32 0.0, %v701
    %v703 = vpop.f32.mrb[0].mxu0
    %v704 = vadd.f32 0.0, %v703
    %705 = vmatprep.mubr.f32.mxu0 0.0
    %706 = vmatmul.mubr.f32.gmra.mrb[0].mxu0 %v615
    %v707 = vpop.f32.mrb[0].mxu0
    %v708 = vadd.f32 0.0, %v707
    %v709 = vpop.f32.mrb[0].mxu0
    %v710 = vadd.f32 0.0, %v709
    %711 = vdwg.mxu0
    %v712 = vadd.f32 %v555, %v684
    %v713 = vadd.f32 %v557, %v686
    %v714 = vadd.f32 %v561, %v690
    %v715 = vadd.f32 %v563, %v692
    %v716 = vadd.f32 %v567, %v696
    %v717 = vadd.f32 %v569, %v698
    %v718 = vadd.f32 %v573, %v702
    %v719 = vadd.f32 %v575, %v704
    %v720 = vadd.f32 %v579, %v708
    %v721 = vadd.f32 %v581, %v710
    %v723 = vlaneseq
    %v724 = vshrl.u32 %v723, 7
    %v725 = vsub.s32 0, %v724
    %v726 = vrot.slane %v99, %v725
    %v727 = vlaneseq
    %v728 = vshrl.u32 %v727, 7
    %v729 = vsub.s32 1, %v728
    %v730 = vrot.slane %v99, %v729
    %v733 = vadd.f32 %v712, %v726
    %v734 = vadd.f32 %v713, %v730
    %v735 = vadd.f32 %v714, %v726
    %v736 = vadd.f32 %v715, %v730
    %v737 = vadd.f32 %v716, %v726
    %v738 = vadd.f32 %v717, %v730
    %v739 = vadd.f32 %v718, %v726
    %v740 = vadd.f32 %v719, %v730
    %v741 = vadd.f32 %v720, %v726
    %v742 = vadd.f32 %v721, %v730
    %744 = vset.pattern.permute.xlu0 0
    %745 = vperm.xlu0 %744, %v87
    %v746 = vpop.permute.xlu0 %745
    %749 = vset.pattern.permute.xlu0 0
    %750 = vperm.xlu0 %749, %v88
    %v751 = vpop.permute.xlu0 %750
    %754 = vset.pattern.permute.xlu0 0
    %755 = vperm.xlu0 %754, %v89
    %v756 = vpop.permute.xlu0 %755
    %759 = vset.pattern.permute.xlu0 0
    %760 = vperm.xlu0 %759, %v90
    %v761 = vpop.permute.xlu0 %760
    %764 = vset.pattern.permute.xlu0 0
    %765 = vperm.xlu0 %764, %v91
    %v766 = vpop.permute.xlu0 %765
    %v768 = vmul.f32 %v733, %v746
    %v769 = vmul.f32 %v734, %v746
    %v770 = vmul.f32 %v735, %v751
    %v771 = vmul.f32 %v736, %v751
    %v772 = vmul.f32 %v737, %v756
    %v773 = vmul.f32 %v738, %v756
    %v774 = vmul.f32 %v739, %v761
    %v775 = vmul.f32 %v740, %v761
    %v776 = vmul.f32 %v741, %v766
    %v777 = vmul.f32 %v742, %v766
    %vm778 = vcmask 130048
    %v780 = vsel %vm778, %v769, 0
    %v783 = vsel %vm778, %v771, 0
    %v786 = vsel %vm778, %v773, 0
    %v789 = vsel %vm778, %v775, 0
    %v792 = vsel %vm778, %v777, 0
    %794 = vmatprep.subr.mxu0 0.0
    %795 = vmatpush1.msra.mxu0 %v67
    %796 = vmatprep.subr.mxu0 0.0
    %797 = vmatpush1.msra.mxu0 %v68
    %798 = vmatprep.subr.mxu0 0.0
    %799 = vmatpush1.msra.mxu0 %v69
    %800 = vmatprep.subr.mxu0 0.0
    %801 = vmatpush1.msra.mxu0 %v70
    %802 = vmatprep.subr.mxu0 0.0
    %803 = vmatpush1.msra.mxu0 %v71
    %804 = vmatprep.subr.mxu0 0.0
    %805 = vmatpush1.msra.mxu0 %v72
    %806 = vmatprep.subr.mxu0 0.0
    %807 = vmatpush1.msra.mxu0 %v73
    %808 = vmatprep.subr.mxu0 0.0
    %809 = vmatpush1.msra.mxu0 %v74
    %810 = vmatprep.subr.mxu0 0.0
    %811 = vmatpush1.msra.mxu0 %v75
    %812 = vmatprep.subr.mxu0 0.0
    %813 = vmatpush1.msra.mxu0 %v76
    %814 = vmatprep.subr.mxu0 0.0
    %815 = vmatpush1.msra.mxu0 %v77
    %816 = vmatprep.subr.mxu0 0.0
    %817 = vmatpush1.msra.mxu0 %v78
    %818 = vmatprep.subr.mxu0 0.0
    %819 = vmatpush1.msra.mxu0 %v79
    %820 = vmatprep.subr.mxu0 0.0
    %821 = vmatpush1.msra.mxu0 %v80
    %822 = vmatprep.subr.mxu0 0.0
    %823 = vmatpush1.msra.mxu0 %v81
    %824 = vmatprep.subr.mxu0 0.0
    %825 = vmatpush1.msra.mxu0 %v82
    %826 = vmatprep.subr.mxu0 0.0
    %827 = vmatpush1.msra.mxu0 %v83
    %828 = vmatprep.subr.mxu0 0.0
    %829 = vmatpush1.msra.mxu0 %v84
    %830 = vmatprep.subr.mxu0 0.0
    %831 = vmatpush1.msra.mxu0 0.0
    %832 = vmatprep.subr.mxu0 0.0
    %833 = vmatpush1.msra.mxu0 0.0
    %834 = vmatprep.subr.mxu0 0.0
    %835 = vmatpush1.msra.mxu0 0.0
    %836 = vmatprep.subr.mxu0 0.0
    %837 = vmatpush1.msra.mxu0 0.0
    %838 = vmatprep.subr.mxu0 0.0
    %839 = vmatpush1.msra.mxu0 0.0
    %840 = vmatprep.subr.mxu0 0.0
    %841 = vmatpush1.msra.mxu0 0.0
    %842 = vmatprep.subr.mxu0 0.0
    %843 = vmatpush1.msra.mxu0 0.0
    %844 = vmatprep.subr.mxu0 0.0
    %845 = vmatpush1.msra.mxu0 0.0
    %846 = vmatprep.subr.mxu0 0.0
    %847 = vmatpush1.msra.mxu0 0.0
    %848 = vmatprep.subr.mxu0 0.0
    %849 = vmatpush1.msra.mxu0 0.0
    %850 = vmatprep.subr.mxu0 0.0
    %851 = vmatpush1.msra.mxu0 0.0
    %852 = vmatprep.subr.mxu0 0.0
    %853 = vmatpush1.msra.mxu0 0.0
    %854 = vmatprep.subr.mxu0 0.0
    %855 = vmatpush1.msra.mxu0 0.0
    %856 = vmatprep.subr.mxu0 0.0
    %857 = vmatpush1.msra.mxu0 0.0
    %858 = vmatprep.mubr.f32.mxu0 %v780
    %859 = vmatmul.mubr.f32.gmra.mrb[0].mxu0 %v768
    %v860 = vpop.f32.mrb[0].mxu0
    %v861 = vadd.f32 0.0, %v860
    %v862 = vpop.f32.mrb[0].mxu0
    %863 = vmatprep.mubr.f32.mxu0 %v783
    %864 = vmatmul.mubr.f32.gmra.mrb[0].mxu0 %v770
    %v865 = vpop.f32.mrb[0].mxu0
    %v866 = vadd.f32 0.0, %v865
    %v867 = vpop.f32.mrb[0].mxu0
    %868 = vmatprep.mubr.f32.mxu0 %v786
    %869 = vmatmul.mubr.f32.gmra.mrb[0].mxu0 %v772
    %v870 = vpop.f32.mrb[0].mxu0
    %v871 = vadd.f32 0.0, %v870
    %v872 = vpop.f32.mrb[0].mxu0
    %873 = vmatprep.mubr.f32.mxu0 %v789
    %874 = vmatmul.mubr.f32.gmra.mrb[0].mxu0 %v774
    %v875 = vpop.f32.mrb[0].mxu0
    %v876 = vadd.f32 0.0, %v875
    %v877 = vpop.f32.mrb[0].mxu0
    %878 = vmatprep.mubr.f32.mxu0 %v792
    %879 = vmatmul.mubr.f32.gmra.mrb[0].mxu0 %v776
    %v880 = vpop.f32.mrb[0].mxu0
    %v881 = vadd.f32 0.0, %v880
    %v882 = vpop.f32.mrb[0].mxu0
    %883 = vdwg.mxu0
    %vm884 = vcmask 64512
    %v885 = vsel %vm884, %v861, 0.0
    %v886 = vsel %vm884, %v866, 0.0
    %v887 = vadd.f32 %v885, %v886
    %v888 = vsel %vm884, %v871, 0.0
    %v889 = vadd.f32 %v887, %v888
    %v890 = vsel %vm884, %v876, 0.0
    %v891 = vadd.f32 %v889, %v890
    %vm892 = vcmask 60416
    %v893 = vsel %vm892, %v881, 0.0
    %v894 = vadd.f32 %v891, %v893
    %v895 = vrot.slane %v894, 4
    %v896 = vadd.f32 %v894, %v895
    %v897 = vrot.slane %v896, 2
    %v898 = vadd.f32 %v896, %v897
    %v899 = vrot.slane %v898, 1
    %v900 = vadd.f32 %v898, %v899
    %v901 = vmul.f32 %v768, %v768
    %v902 = vmul.f32 %v769, %v769
    %v903 = vmul.f32 %v770, %v770
    %v904 = vmul.f32 %v771, %v771
    %v905 = vmul.f32 %v772, %v772
    %v906 = vmul.f32 %v773, %v773
    %v907 = vmul.f32 %v774, %v774
    %v908 = vmul.f32 %v775, %v775
    %v909 = vmul.f32 %v776, %v776
    %v910 = vmul.f32 %v777, %v777
    %v912 = vsel %vm778, %v902, 0
    %v915 = vsel %vm778, %v904, 0
    %v918 = vsel %vm778, %v906, 0
    %v921 = vsel %vm778, %v908, 0
    %v924 = vsel %vm778, %v910, 0
    %926 = vmatprep.subr.mxu0 0.0
    %927 = vmatpush1.msra.mxu0 %v67
    %928 = vmatprep.subr.mxu0 0.0
    %929 = vmatpush1.msra.mxu0 %v68
    %930 = vmatprep.subr.mxu0 0.0
    %931 = vmatpush1.msra.mxu0 %v69
    %932 = vmatprep.subr.mxu0 0.0
    %933 = vmatpush1.msra.mxu0 %v70
    %934 = vmatprep.subr.mxu0 0.0
    %935 = vmatpush1.msra.mxu0 %v71
    %936 = vmatprep.subr.mxu0 0.0
    %937 = vmatpush1.msra.mxu0 %v72
    %938 = vmatprep.subr.mxu0 0.0
    %939 = vmatpush1.msra.mxu0 %v73
    %940 = vmatprep.subr.mxu0 0.0
    %941 = vmatpush1.msra.mxu0 %v74
    %942 = vmatprep.subr.mxu0 0.0
    %943 = vmatpush1.msra.mxu0 %v75
    %944 = vmatprep.subr.mxu0 0.0
    %945 = vmatpush1.msra.mxu0 %v76
    %946 = vmatprep.subr.mxu0 0.0
    %947 = vmatpush1.msra.mxu0 %v77
    %948 = vmatprep.subr.mxu0 0.0
    %949 = vmatpush1.msra.mxu0 %v78
    %950 = vmatprep.subr.mxu0 0.0
    %951 = vmatpush1.msra.mxu0 %v79
    %952 = vmatprep.subr.mxu0 0.0
    %953 = vmatpush1.msra.mxu0 %v80
    %954 = vmatprep.subr.mxu0 0.0
    %955 = vmatpush1.msra.mxu0 %v81
    %956 = vmatprep.subr.mxu0 0.0
    %957 = vmatpush1.msra.mxu0 %v82
    %958 = vmatprep.subr.mxu0 0.0
    %959 = vmatpush1.msra.mxu0 %v83
    %960 = vmatprep.subr.mxu0 0.0
    %961 = vmatpush1.msra.mxu0 %v84
    %962 = vmatprep.subr.mxu0 0.0
    %963 = vmatpush1.msra.mxu0 0.0
    %964 = vmatprep.subr.mxu0 0.0
    %965 = vmatpush1.msra.mxu0 0.0
    %966 = vmatprep.subr.mxu0 0.0
    %967 = vmatpush1.msra.mxu0 0.0
    %968 = vmatprep.subr.mxu0 0.0
    %969 = vmatpush1.msra.mxu0 0.0
    %970 = vmatprep.subr.mxu0 0.0
    %971 = vmatpush1.msra.mxu0 0.0
    %972 = vmatprep.subr.mxu0 0.0
    %973 = vmatpush1.msra.mxu0 0.0
    %974 = vmatprep.subr.mxu0 0.0
    %975 = vmatpush1.msra.mxu0 0.0
    %976 = vmatprep.subr.mxu0 0.0
    %977 = vmatpush1.msra.mxu0 0.0
    %978 = vmatprep.subr.mxu0 0.0
    %979 = vmatpush1.msra.mxu0 0.0
    %980 = vmatprep.subr.mxu0 0.0
    %981 = vmatpush1.msra.mxu0 0.0
    %982 = vmatprep.subr.mxu0 0.0
    %983 = vmatpush1.msra.mxu0 0.0
    %984 = vmatprep.subr.mxu0 0.0
    %985 = vmatpush1.msra.mxu0 0.0
    %986 = vmatprep.subr.mxu0 0.0
    %987 = vmatpush1.msra.mxu0 0.0
    %988 = vmatprep.subr.mxu0 0.0
    %989 = vmatpush1.msra.mxu0 0.0
    %990 = vmatprep.mubr.f32.mxu0 %v912
    %991 = vmatmul.mubr.f32.gmra.mrb[0].mxu0 %v901
    %v992 = vpop.f32.mrb[0].mxu0
    %v993 = vadd.f32 0.0, %v992
    %v994 = vpop.f32.mrb[0].mxu0
    %995 = vmatprep.mubr.f32.mxu0 %v915
    %996 = vmatmul.mubr.f32.gmra.mrb[0].mxu0 %v903
    %v997 = vpop.f32.mrb[0].mxu0
    %v998 = vadd.f32 0.0, %v997
    %v999 = vpop.f32.mrb[0].mxu0
    %1000 = vmatprep.mubr.f32.mxu0 %v918
    %1001 = vmatmul.mubr.f32.gmra.mrb[0].mxu0 %v905
    %v1002 = vpop.f32.mrb[0].mxu0
    %v1003 = vadd.f32 0.0, %v1002
    %v1004 = vpop.f32.mrb[0].mxu0
    %1005 = vmatprep.mubr.f32.mxu0 %v921
    %1006 = vmatmul.mubr.f32.gmra.mrb[0].mxu0 %v907
    %v1007 = vpop.f32.mrb[0].mxu0
    %v1008 = vadd.f32 0.0, %v1007
    %v1009 = vpop.f32.mrb[0].mxu0
    %1010 = vmatprep.mubr.f32.mxu0 %v924
    %1011 = vmatmul.mubr.f32.gmra.mrb[0].mxu0 %v909
    %v1012 = vpop.f32.mrb[0].mxu0
    %v1013 = vadd.f32 0.0, %v1012
    %v1014 = vpop.f32.mrb[0].mxu0
    %1015 = vdwg.mxu0
    %v1016 = vsel %vm884, %v993, 0.0
    %v1017 = vsel %vm884, %v998, 0.0
    %v1018 = vadd.f32 %v1016, %v1017
    %v1019 = vsel %vm884, %v1003, 0.0
    %v1020 = vadd.f32 %v1018, %v1019
    %v1021 = vsel %vm884, %v1008, 0.0
    %v1022 = vadd.f32 %v1020, %v1021
    %v1023 = vsel %vm892, %v1013, 0.0
    %v1024 = vadd.f32 %v1022, %v1023
    %v1025 = vrot.slane %v1024, 4
    %v1026 = vadd.f32 %v1024, %v1025
    %v1027 = vrot.slane %v1026, 2
    %v1028 = vadd.f32 %v1026, %v1027
    %v1029 = vrot.slane %v1028, 1
    %v1030 = vadd.f32 %v1028, %v1029
    %v1031 = vrcp.pop 512.0
    %v1032 = vmul.f32 %v900, %v1031
    %v1033 = vmul.f32 %v1030, %v1031
    %v1034 = vmul.f32 %v1032, %v1032
    %v1035 = vsub.f32 %v1033, %v1034
    %v1036 = vadd.f32 %v1035, 1e-05
    %v1037 = vrsqrt.pop %v1036
    %v1038 = vmul.f32 %v1037, %v92
    %v1039 = vmul.f32 %v1032, %v1038
    %v1040 = vsub.f32 %v93, %v1039
    %v1041 = vlaneseq
    %v1042 = vshrl.u32 %v1041, 7
    %v1043 = vsub.s32 0, %v1042
    %v1044 = vrot.slane %v1038, %v1043
    %v1046 = vsel %vm884, %v1044, 0
    %1048 = vmatprep.subr.mxu0 %v86
    %1049 = vmatpush1.msra.mxu0 %v85
    %1050 = vmatprep.subr.mxu0 0.0
    %1051 = vmatpush1.msra.mxu0 0.0
    %1052 = vmatprep.subr.mxu0 0.0
    %1053 = vmatpush1.msra.mxu0 0.0
    %1054 = vmatprep.subr.mxu0 0.0
    %1055 = vmatpush1.msra.mxu0 0.0
    %1056 = vmatprep.subr.mxu0 0.0
    %1057 = vmatpush1.msra.mxu0 0.0
    %1058 = vmatprep.subr.mxu0 0.0
    %1059 = vmatpush1.msra.mxu0 0.0
    %1060 = vmatprep.subr.mxu0 0.0
    %1061 = vmatpush1.msra.mxu0 0.0
    %1062 = vmatprep.subr.mxu0 0.0
    %1063 = vmatpush1.msra.mxu0 0.0
    %1064 = vmatprep.subr.mxu0 0.0
    %1065 = vmatpush1.msra.mxu0 0.0
    %1066 = vmatprep.subr.mxu0 0.0
    %1067 = vmatpush1.msra.mxu0 0.0
    %1068 = vmatprep.subr.mxu0 0.0
    %1069 = vmatpush1.msra.mxu0 0.0
    %1070 = vmatprep.subr.mxu0 0.0
    %1071 = vmatpush1.msra.mxu0 0.0
    %1072 = vmatprep.subr.mxu0 0.0
    %1073 = vmatpush1.msra.mxu0 0.0
    %1074 = vmatprep.subr.mxu0 0.0
    %1075 = vmatpush1.msra.mxu0 0.0
    %1076 = vmatprep.subr.mxu0 0.0
    %1077 = vmatpush1.msra.mxu0 0.0
    %1078 = vmatprep.subr.mxu0 0.0
    %1079 = vmatpush1.msra.mxu0 0.0
    %1080 = vmatprep.subr.mxu0 0.0
    %1081 = vmatpush1.msra.mxu0 0.0
    %1082 = vmatprep.subr.mxu0 0.0
    %1083 = vmatpush1.msra.mxu0 0.0
    %1084 = vmatprep.subr.mxu0 0.0
    %1085 = vmatpush1.msra.mxu0 0.0
    %1086 = vmatprep.subr.mxu0 0.0
    %1087 = vmatpush1.msra.mxu0 0.0
    %1088 = vmatprep.subr.mxu0 0.0
    %1089 = vmatpush1.msra.mxu0 0.0
    %1090 = vmatprep.subr.mxu0 0.0
    %1091 = vmatpush1.msra.mxu0 0.0
    %1092 = vmatprep.subr.mxu0 0.0
    %1093 = vmatpush1.msra.mxu0 0.0
    %1094 = vmatprep.subr.mxu0 0.0
    %1095 = vmatpush1.msra.mxu0 0.0
    %1096 = vmatprep.subr.mxu0 0.0
    %1097 = vmatpush1.msra.mxu0 0.0
    %1098 = vmatprep.subr.mxu0 0.0
    %1099 = vmatpush1.msra.mxu0 0.0
    %1100 = vmatprep.subr.mxu0 0.0
    %1101 = vmatpush1.msra.mxu0 0.0
    %1102 = vmatprep.subr.mxu0 0.0
    %1103 = vmatpush1.msra.mxu0 0.0
    %1104 = vmatprep.subr.mxu0 0.0
    %1105 = vmatpush1.msra.mxu0 0.0
    %1106 = vmatprep.subr.mxu0 0.0
    %1107 = vmatpush1.msra.mxu0 0.0
    %1108 = vmatprep.subr.mxu0 0.0
    %1109 = vmatpush1.msra.mxu0 0.0
    %1110 = vmatprep.subr.mxu0 0.0
    %1111 = vmatpush1.msra.mxu0 0.0
    %1112 = vmatprep.mubr.f32.mxu0 0.0
    %1113 = vmatmul.mubr.f32.gmra.mrb[0].mxu0 %v1046
    %v1114 = vpop.f32.mrb[0].mxu0
    %v1115 = vadd.f32 0.0, %v1114
    %v1116 = vpop.f32.mrb[0].mxu0
    %v1117 = vadd.f32 0.0, %v1116
    %1118 = vdwg.mxu0
    %v1119 = vlaneseq
    %v1120 = vshrl.u32 %v1119, 7
    %v1121 = vsub.s32 0, %v1120
    %v1122 = vrot.slane %v1115, %v1121
    %v1123 = vlaneseq
    %v1124 = vshrl.u32 %v1123, 7
    %v1125 = vsub.s32 0, %v1124
    %v1126 = vrot.slane %v1117, %v1125
    %v1127 = vmul.f32 %v768, %v1122
    %v1128 = vmul.f32 %v769, %v1126
    %v1129 = vmul.f32 %v770, %v1122
    %v1130 = vmul.f32 %v771, %v1126
    %v1131 = vmul.f32 %v772, %v1122
    %v1132 = vmul.f32 %v773, %v1126
    %v1133 = vmul.f32 %v774, %v1122
    %v1134 = vmul.f32 %v775, %v1126
    %v1135 = vmul.f32 %v776, %v1122
    %v1136 = vmul.f32 %v777, %v1126
    %v1138 = vlaneseq
    %v1139 = vshrl.u32 %v1138, 7
    %v1140 = vsub.s32 0, %v1139
    %v1141 = vrot.slane %v1040, %v1140
    %v1142 = vsel %vm884, %v1141, 0
    %1144 = vmatprep.subr.mxu0 %v86
    %1145 = vmatpush1.msra.mxu0 %v85
    %1146 = vmatprep.subr.mxu0 0.0
    %1147 = vmatpush1.msra.mxu0 0.0
    %1148 = vmatprep.subr.mxu0 0.0
    %1149 = vmatpush1.msra.mxu0 0.0
    %1150 = vmatprep.subr.mxu0 0.0
    %1151 = vmatpush1.msra.mxu0 0.0
    %1152 = vmatprep.subr.mxu0 0.0
    %1153 = vmatpush1.msra.mxu0 0.0
    %1154 = vmatprep.subr.mxu0 0.0
    %1155 = vmatpush1.msra.mxu0 0.0
    %1156 = vmatprep.subr.mxu0 0.0
    %1157 = vmatpush1.msra.mxu0 0.0
    %1158 = vmatprep.subr.mxu0 0.0
    %1159 = vmatpush1.msra.mxu0 0.0
    %1160 = vmatprep.subr.mxu0 0.0
    %1161 = vmatpush1.msra.mxu0 0.0
    %1162 = vmatprep.subr.mxu0 0.0
    %1163 = vmatpush1.msra.mxu0 0.0
    %1164 = vmatprep.subr.mxu0 0.0
    %1165 = vmatpush1.msra.mxu0 0.0
    %1166 = vmatprep.subr.mxu0 0.0
    %1167 = vmatpush1.msra.mxu0 0.0
    %1168 = vmatprep.subr.mxu0 0.0
    %1169 = vmatpush1.msra.mxu0 0.0
    %1170 = vmatprep.subr.mxu0 0.0
    %1171 = vmatpush1.msra.mxu0 0.0
    %1172 = vmatprep.subr.mxu0 0.0
    %1173 = vmatpush1.msra.mxu0 0.0
    %1174 = vmatprep.subr.mxu0 0.0
    %1175 = vmatpush1.msra.mxu0 0.0
    %1176 = vmatprep.subr.mxu0 0.0
    %1177 = vmatpush1.msra.mxu0 0.0
    %1178 = vmatprep.subr.mxu0 0.0
    %1179 = vmatpush1.msra.mxu0 0.0
    %1180 = vmatprep.subr.mxu0 0.0
    %1181 = vmatpush1.msra.mxu0 0.0
    %1182 = vmatprep.subr.mxu0 0.0
    %1183 = vmatpush1.msra.mxu0 0.0
    %1184 = vmatprep.subr.mxu0 0.0
    %1185 = vmatpush1.msra.mxu0 0.0
    %1186 = vmatprep.subr.mxu0 0.0
    %1187 = vmatpush1.msra.mxu0 0.0
    %1188 = vmatprep.subr.mxu0 0.0
    %1189 = vmatpush1.msra.mxu0 0.0
    %1190 = vmatprep.subr.mxu0 0.0
    %1191 = vmatpush1.msra.mxu0 0.0
    %1192 = vmatprep.subr.mxu0 0.0
    %1193 = vmatpush1.msra.mxu0 0.0
    %1194 = vmatprep.subr.mxu0 0.0
    %1195 = vmatpush1.msra.mxu0 0.0
    %1196 = vmatprep.subr.mxu0 0.0
    %1197 = vmatpush1.msra.mxu0 0.0
    %1198 = vmatprep.subr.mxu0 0.0
    %1199 = vmatpush1.msra.mxu0 0.0
    %1200 = vmatprep.subr.mxu0 0.0
    %1201 = vmatpush1.msra.mxu0 0.0
    %1202 = vmatprep.subr.mxu0 0.0
    %1203 = vmatpush1.msra.mxu0 0.0
    %1204 = vmatprep.subr.mxu0 0.0
    %1205 = vmatpush1.msra.mxu0 0.0
    %1206 = vmatprep.subr.mxu0 0.0
    %1207 = vmatpush1.msra.mxu0 0.0
    %1208 = vmatprep.mubr.f32.mxu0 0.0
    %1209 = vmatmul.mubr.f32.gmra.mrb[0].mxu0 %v1142
    %v1210 = vpop.f32.mrb[0].mxu0
    %v1211 = vadd.f32 0.0, %v1210
    %v1212 = vpop.f32.mrb[0].mxu0
    %v1213 = vadd.f32 0.0, %v1212
    %1214 = vdwg.mxu0
    %v1215 = vlaneseq
    %v1216 = vshrl.u32 %v1215, 7
    %v1217 = vsub.s32 0, %v1216
    %v1218 = vrot.slane %v1211, %v1217
    %v1219 = vlaneseq
    %v1220 = vshrl.u32 %v1219, 7
    %v1221 = vsub.s32 0, %v1220
    %v1222 = vrot.slane %v1213, %v1221
    %v1223 = vadd.f32 %v1127, %v1218
    %v1224 = vadd.f32 %v1128, %v1222
    %v1225 = vadd.f32 %v1129, %v1218
    %v1226 = vadd.f32 %v1130, %v1222
    %v1227 = vadd.f32 %v1131, %v1218
    %v1228 = vadd.f32 %v1132, %v1222
    %v1229 = vadd.f32 %v1133, %v1218
    %v1230 = vadd.f32 %v1134, %v1222
    %v1231 = vadd.f32 %v1135, %v1218
    %v1232 = vadd.f32 %v1136, %v1222
    %v1233 = vmax.f32 %v1223, 0.0
    %v1234 = vmax.f32 %v1224, 0.0
    %v1235 = vmax.f32 %v1225, 0.0
    %v1236 = vmax.f32 %v1226, 0.0
    %v1237 = vmax.f32 %v1227, 0.0
    %v1238 = vmax.f32 %v1228, 0.0
    %v1239 = vmax.f32 %v1229, 0.0
    %v1240 = vmax.f32 %v1230, 0.0
    %v1241 = vmax.f32 %v1231, 0.0
    %v1242 = vmax.f32 %v1232, 0.0
    %v1243 = vmul.f32 %v1233, %v746
    %v1244 = vmul.f32 %v1234, %v746
    %v1245 = vmul.f32 %v1235, %v751
    %v1246 = vmul.f32 %v1236, %v751
    %v1247 = vmul.f32 %v1237, %v756
    %v1248 = vmul.f32 %v1238, %v756
    %v1249 = vmul.f32 %v1239, %v761
    %v1250 = vmul.f32 %v1240, %v761
    %v1251 = vmul.f32 %v1241, %v766
    %v1252 = vmul.f32 %v1242, %v766
    %v1253 = vld [vmem:[%s5] sm:$0x3]
    %v1255 = vsel %vm121, %v1251, 0
    %v1258 = vsel %vm121, %v1252, 0
    %1260 = vmatprep.subr.mxu0 %v1244
    %1261 = vmatpush1.msra.mxu0 %v1243
    %1262 = vmatprep.subr.mxu0 %v1246
    %1263 = vmatpush1.msra.mxu0 %v1245
    %1264 = vmatprep.subr.mxu0 %v1248
    %1265 = vmatpush1.msra.mxu0 %v1247
    %1266 = vmatprep.subr.mxu0 %v1250
    %1267 = vmatpush1.msra.mxu0 %v1249
    %1268 = vmatprep.subr.mxu0 %v1258
    %1269 = vmatpush1.msra.mxu0 %v1255
    %1270 = vmatprep.subr.mxu0 0.0
    %1271 = vmatpush1.msra.mxu0 0.0
    %1272 = vmatprep.subr.mxu0 0.0
    %1273 = vmatpush1.msra.mxu0 0.0
    %1274 = vmatprep.subr.mxu0 0.0
    %1275 = vmatpush1.msra.mxu0 0.0
    %1276 = vmatprep.subr.mxu0 0.0
    %1277 = vmatpush1.msra.mxu0 0.0
    %1278 = vmatprep.subr.mxu0 0.0
    %1279 = vmatpush1.msra.mxu0 0.0
    %1280 = vmatprep.subr.mxu0 0.0
    %1281 = vmatpush1.msra.mxu0 0.0
    %1282 = vmatprep.subr.mxu0 0.0
    %1283 = vmatpush1.msra.mxu0 0.0
    %1284 = vmatprep.subr.mxu0 0.0
    %1285 = vmatpush1.msra.mxu0 0.0
    %1286 = vmatprep.subr.mxu0 0.0
    %1287 = vmatpush1.msra.mxu0 0.0
    %1288 = vmatprep.subr.mxu0 0.0
    %1289 = vmatpush1.msra.mxu0 0.0
    %1290 = vmatprep.subr.mxu0 0.0
    %1291 = vmatpush1.msra.mxu0 0.0
    %1292 = vmatprep.subr.mxu0 0.0
    %1293 = vmatpush1.msra.mxu0 0.0
    %1294 = vmatprep.subr.mxu0 0.0
    %1295 = vmatpush1.msra.mxu0 0.0
    %1296 = vmatprep.subr.mxu0 0.0
    %1297 = vmatpush1.msra.mxu0 0.0
    %1298 = vmatprep.subr.mxu0 0.0
    %1299 = vmatpush1.msra.mxu0 0.0
    %1300 = vmatprep.subr.mxu0 0.0
    %1301 = vmatpush1.msra.mxu0 0.0
    %1302 = vmatprep.subr.mxu0 0.0
    %1303 = vmatpush1.msra.mxu0 0.0
    %1304 = vmatprep.subr.mxu0 0.0
    %1305 = vmatpush1.msra.mxu0 0.0
    %1306 = vmatprep.subr.mxu0 0.0
    %1307 = vmatpush1.msra.mxu0 0.0
    %1308 = vmatprep.subr.mxu0 0.0
    %1309 = vmatpush1.msra.mxu0 0.0
    %1310 = vmatprep.subr.mxu0 0.0
    %1311 = vmatpush1.msra.mxu0 0.0
    %1312 = vmatprep.subr.mxu0 0.0
    %1313 = vmatpush1.msra.mxu0 0.0
    %1314 = vmatprep.subr.mxu0 0.0
    %1315 = vmatpush1.msra.mxu0 0.0
    %1316 = vmatprep.subr.mxu0 0.0
    %1317 = vmatpush1.msra.mxu0 0.0
    %1318 = vmatprep.subr.mxu0 0.0
    %1319 = vmatpush1.msra.mxu0 0.0
    %1320 = vmatprep.subr.mxu0 0.0
    %1321 = vmatpush1.msra.mxu0 0.0
    %1322 = vmatprep.subr.mxu0 0.0
    %1323 = vmatpush1.msra.mxu0 0.0
    %1324 = vmatprep.mubr.f32.mxu0 0.0
    %1325 = vmatmul.mubr.f32.gmra.mrb[0].mxu0 %v107
    %v1326 = vpop.f32.mrb[0].mxu0
    %v1327 = vadd.f32 0.0, %v1326
    %v1328 = vpop.f32.mrb[0].mxu0
    %v1329 = vadd.f32 0.0, %v1328
    %1330 = vmatprep.mubr.f32.mxu0 0.0
    %1331 = vmatmul.mubr.f32.gmra.mrb[0].mxu0 %v110
    %v1332 = vpop.f32.mrb[0].mxu0
    %v1333 = vadd.f32 0.0, %v1332
    %v1334 = vpop.f32.mrb[0].mxu0
    %v1335 = vadd.f32 0.0, %v1334
    %1336 = vmatprep.mubr.f32.mxu0 0.0
    %1337 = vmatmul.mubr.f32.gmra.mrb[0].mxu0 %v113
    %v1338 = vpop.f32.mrb[0].mxu0
    %v1339 = vadd.f32 0.0, %v1338
    %v1340 = vpop.f32.mrb[0].mxu0
    %v1341 = vadd.f32 0.0, %v1340
    %1342 = vmatprep.mubr.f32.mxu0 0.0
    %1343 = vmatmul.mubr.f32.gmra.mrb[0].mxu0 %v116
    %v1344 = vpop.f32.mrb[0].mxu0
    %v1345 = vadd.f32 0.0, %v1344
    %v1346 = vpop.f32.mrb[0].mxu0
    %v1347 = vadd.f32 0.0, %v1346
    %1348 = vmatprep.mubr.f32.mxu0 0.0
    %1349 = vmatmul.mubr.f32.gmra.mrb[0].mxu0 %v119
    %v1350 = vpop.f32.mrb[0].mxu0
    %v1351 = vadd.f32 0.0, %v1350
    %v1352 = vpop.f32.mrb[0].mxu0
    %v1353 = vadd.f32 0.0, %v1352
    %1354 = vdwg.mxu0
    %1355 = vmatprep.subr.mxu0 %v1244
    %1356 = vmatpush1.msra.mxu0 %v1243
    %1357 = vmatprep.subr.mxu0 %v1246
    %1358 = vmatpush1.msra.mxu0 %v1245
    %1359 = vmatprep.subr.mxu0 %v1248
    %1360 = vmatpush1.msra.mxu0 %v1247
    %1361 = vmatprep.subr.mxu0 %v1250
    %1362 = vmatpush1.msra.mxu0 %v1249
    %1363 = vmatprep.subr.mxu0 %v1258
    %1364 = vmatpush1.msra.mxu0 %v1255
    %1365 = vmatprep.subr.mxu0 0.0
    %1366 = vmatpush1.msra.mxu0 0.0
    %1367 = vmatprep.subr.mxu0 0.0
    %1368 = vmatpush1.msra.mxu0 0.0
    %1369 = vmatprep.subr.mxu0 0.0
    %1370 = vmatpush1.msra.mxu0 0.0
    %1371 = vmatprep.subr.mxu0 0.0
    %1372 = vmatpush1.msra.mxu0 0.0
    %1373 = vmatprep.subr.mxu0 0.0
    %1374 = vmatpush1.msra.mxu0 0.0
    %1375 = vmatprep.subr.mxu0 0.0
    %1376 = vmatpush1.msra.mxu0 0.0
    %1377 = vmatprep.subr.mxu0 0.0
    %1378 = vmatpush1.msra.mxu0 0.0
    %1379 = vmatprep.subr.mxu0 0.0
    %1380 = vmatpush1.msra.mxu0 0.0
    %1381 = vmatprep.subr.mxu0 0.0
    %1382 = vmatpush1.msra.mxu0 0.0
    %1383 = vmatprep.subr.mxu0 0.0
    %1384 = vmatpush1.msra.mxu0 0.0
    %1385 = vmatprep.subr.mxu0 0.0
    %1386 = vmatpush1.msra.mxu0 0.0
    %1387 = vmatprep.subr.mxu0 0.0
    %1388 = vmatpush1.msra.mxu0 0.0
    %1389 = vmatprep.subr.mxu0 0.0
    %1390 = vmatpush1.msra.mxu0 0.0
    %1391 = vmatprep.subr.mxu0 0.0
    %1392 = vmatpush1.msra.mxu0 0.0
    %1393 = vmatprep.subr.mxu0 0.0
    %1394 = vmatpush1.msra.mxu0 0.0
    %1395 = vmatprep.subr.mxu0 0.0
    %1396 = vmatpush1.msra.mxu0 0.0
    %1397 = vmatprep.subr.mxu0 0.0
    %1398 = vmatpush1.msra.mxu0 0.0
    %1399 = vmatprep.subr.mxu0 0.0
    %1400 = vmatpush1.msra.mxu0 0.0
    %1401 = vmatprep.subr.mxu0 0.0
    %1402 = vmatpush1.msra.mxu0 0.0
    %1403 = vmatprep.subr.mxu0 0.0
    %1404 = vmatpush1.msra.mxu0 0.0
    %1405 = vmatprep.subr.mxu0 0.0
    %1406 = vmatpush1.msra.mxu0 0.0
    %1407 = vmatprep.subr.mxu0 0.0
    %1408 = vmatpush1.msra.mxu0 0.0
    %1409 = vmatprep.subr.mxu0 0.0
    %1410 = vmatpush1.msra.mxu0 0.0
    %1411 = vmatprep.subr.mxu0 0.0
    %1412 = vmatpush1.msra.mxu0 0.0
    %1413 = vmatprep.subr.mxu0 0.0
    %1414 = vmatpush1.msra.mxu0 0.0
    %1415 = vmatprep.subr.mxu0 0.0
    %1416 = vmatpush1.msra.mxu0 0.0
    %1417 = vmatprep.subr.mxu0 0.0
    %1418 = vmatpush1.msra.mxu0 0.0
    %1419 = vmatprep.mubr.f32.mxu0 0.0
    %1420 = vmatmul.mubr.f32.gmra.mrb[0].mxu0 %v222
    %v1421 = vpop.f32.mrb[0].mxu0
    %v1422 = vadd.f32 0.0, %v1421
    %v1423 = vpop.f32.mrb[0].mxu0
    %v1424 = vadd.f32 0.0, %v1423
    %1425 = vmatprep.mubr.f32.mxu0 0.0
    %1426 = vmatmul.mubr.f32.gmra.mrb[0].mxu0 %v225
    %v1427 = vpop.f32.mrb[0].mxu0
    %v1428 = vadd.f32 0.0, %v1427
    %v1429 = vpop.f32.mrb[0].mxu0
    %v1430 = vadd.f32 0.0, %v1429
    %1431 = vmatprep.mubr.f32.mxu0 0.0
    %1432 = vmatmul.mubr.f32.gmra.mrb[0].mxu0 %v228
    %v1433 = vpop.f32.mrb[0].mxu0
    %v1434 = vadd.f32 0.0, %v1433
    %v1435 = vpop.f32.mrb[0].mxu0
    %v1436 = vadd.f32 0.0, %v1435
    %1437 = vmatprep.mubr.f32.mxu0 0.0
    %1438 = vmatmul.mubr.f32.gmra.mrb[0].mxu0 %v231
    %v1439 = vpop.f32.mrb[0].mxu0
    %v1440 = vadd.f32 0.0, %v1439
    %v1441 = vpop.f32.mrb[0].mxu0
    %v1442 = vadd.f32 0.0, %v1441
    %1443 = vmatprep.mubr.f32.mxu0 0.0
    %1444 = vmatmul.mubr.f32.gmra.mrb[0].mxu0 %v234
    %v1445 = vpop.f32.mrb[0].mxu0
    %v1446 = vadd.f32 0.0, %v1445
    %v1447 = vpop.f32.mrb[0].mxu0
    %v1448 = vadd.f32 0.0, %v1447
    %1449 = vdwg.mxu0
    %v1450 = vld [vmem:[#allocation5] sm:$0xff]
    %v1451 = vld [vmem:[#allocation5 + $0x8] sm:$0xff]
    %v1452 = vld [vmem:[#allocation5 + $0x10] sm:$0xff]
    %v1453 = vld [vmem:[#allocation5 + $0x18] sm:$0xff]
    %v1454 = vld [vmem:[#allocation5 + $0x20] sm:$0xff]
    %v1455 = vld [vmem:[#allocation5 + $0x28] sm:$0xff]
    %v1456 = vld [vmem:[#allocation5 + $0x30] sm:$0xff]
    %v1457 = vld [vmem:[#allocation5 + $0x38] sm:$0xff]
    %v1458 = vld [vmem:[#allocation5 + $0x40] sm:$0xff]
    %v1459 = vld [vmem:[#allocation5 + $0x48] sm:$0xff]
    %v1460 = vld [vmem:[#allocation5 + $0x50] sm:$0xff]
    %v1461 = vld [vmem:[#allocation5 + $0x58] sm:$0xff]
    %v1462 = vld [vmem:[#allocation5 + $0x60] sm:$0xff]
    %v1463 = vld [vmem:[#allocation5 + $0x68] sm:$0xff]
    %v1464 = vld [vmem:[#allocation5 + $0x70] sm:$0xff]
    %v1465 = vld [vmem:[#allocation5 + $0x78] sm:$0xff]
    %v1466 = vld [vmem:[#allocation5 + $0x80] sm:$0xff]
    %v1467 = vld [vmem:[#allocation5 + $0x88] sm:$0xff]
    %v1468 = vld [vmem:[#allocation5 + $0x90] sm:$0xff]
    %v1469 = vld [vmem:[#allocation5 + $0x98] sm:$0xff]
    %v1470 = vld [vmem:[#allocation5 + $0xa0] sm:$0xff]
    %v1471 = vld [vmem:[#allocation5 + $0xa8] sm:$0xff]
    %v1472 = vld [vmem:[#allocation5 + $0xb0] sm:$0xff]
    %v1473 = vld [vmem:[#allocation5 + $0xb8] sm:$0xff]
    %v1474 = vld [vmem:[#allocation5 + $0xc0] sm:$0xff]
    %v1475 = vld [vmem:[#allocation5 + $0xc8] sm:$0xff]
    %v1476 = vld [vmem:[#allocation5 + $0xd0] sm:$0xff]
    %v1477 = vld [vmem:[#allocation5 + $0xd8] sm:$0xff]
    %v1478 = vld [vmem:[#allocation5 + $0xe0] sm:$0xff]
    %v1479 = vld [vmem:[#allocation5 + $0xe8] sm:$0xff]
    %v1480 = vld [vmem:[#allocation5 + $0xf0] sm:$0xff]
    %v1481 = vld [vmem:[#allocation5 + $0xf8] sm:$0xff]
    %v1482 = vld [vmem:[#allocation5 + $0x100] sm:$0xff]
    %v1483 = vld [vmem:[#allocation5 + $0x108] sm:$0xff]
    %v1484 = vld [vmem:[#allocation5 + $0x110] sm:$0xff]
    %v1485 = vld [vmem:[#allocation5 + $0x118] sm:$0xff]
    %s1486 = scalar_lea.vmem [#allocation5], 288
    %v1487 = vld [vmem:[%s1486] sm:$0xff]
    %v1488 = vld [vmem:[%s1486 + $0x8] sm:$0xff]
    %v1489 = vld [vmem:[%s1486 + $0x10] sm:$0xff]
    %v1490 = vld [vmem:[%s1486 + $0x18] sm:$0xff]
    %v1491 = vld [vmem:[%s1486 + $0x20] sm:$0xff]
    %v1492 = vld [vmem:[%s1486 + $0x28] sm:$0xff]
    %v1493 = vld [vmem:[%s1486 + $0x30] sm:$0xff]
    %v1494 = vld [vmem:[%s1486 + $0x38] sm:$0xff]
    %v1495 = vld [vmem:[%s1486 + $0x40] sm:$0xff]
    %v1496 = vld [vmem:[%s1486 + $0x48] sm:$0xff]
    %v1497 = vld [vmem:[%s1486 + $0x50] sm:$0xff]
    %v1498 = vld [vmem:[%s1486 + $0x58] sm:$0xff]
    %v1499 = vld [vmem:[%s1486 + $0x60] sm:$0xff]
    %v1500 = vld [vmem:[%s1486 + $0x68] sm:$0xff]
    %v1501 = vld [vmem:[%s1486 + $0x70] sm:$0xff]
    %v1502 = vld [vmem:[%s1486 + $0x78] sm:$0xff]
    %v1503 = vld [vmem:[%s1486 + $0x80] sm:$0xff]
    %v1504 = vld [vmem:[%s1486 + $0x88] sm:$0xff]
    %v1505 = vld [vmem:[%s1486 + $0x90] sm:$0xff]
    %v1506 = vld [vmem:[%s1486 + $0x98] sm:$0xff]
    %v1507 = vld [vmem:[%s1486 + $0xa0] sm:$0xff]
    %v1508 = vld [vmem:[%s1486 + $0xa8] sm:$0xff]
    %v1509 = vld [vmem:[%s1486 + $0xb0] sm:$0xff]
    %v1510 = vld [vmem:[%s1486 + $0xb8] sm:$0xff]
    %v1511 = vld [vmem:[%s1486 + $0xc0] sm:$0xff]
    %v1512 = vld [vmem:[%s1486 + $0xc8] sm:$0xff]
    %v1513 = vld [vmem:[%s1486 + $0xd0] sm:$0xff]
    %v1514 = vld [vmem:[%s1486 + $0xd8] sm:$0xff]
    %v1515 = vld [vmem:[%s1486 + $0xe0] sm:$0xff]
    %v1516 = vld [vmem:[%s1486 + $0xe8] sm:$0xff]
    %v1517 = vld [vmem:[%s1486 + $0xf0] sm:$0xff]
    %v1518 = vld [vmem:[%s1486 + $0xf8] sm:$0xff]
    %v1519 = vld [vmem:[%s1486 + $0x100] sm:$0xff]
    %v1520 = vld [vmem:[%s1486 + $0x108] sm:$0xff]
    %v1521 = vld [vmem:[%s1486 + $0x110] sm:$0xff]
    %v1522 = vld [vmem:[%s1486 + $0x118] sm:$0xff]
    %v1524 = vsel %vm778, %v1244, 0
    %v1527 = vsel %vm778, %v1246, 0
    %v1530 = vsel %vm778, %v1248, 0
    %v1533 = vsel %vm778, %v1250, 0
    %v1535 = vsel %vm778, %v1252, 0
    %1537 = vmatprep.subr.mxu0 %v1488
    %1538 = vmatpush1.msra.mxu0 %v1487
    %1539 = vmatprep.subr.mxu0 %v1490
    %1540 = vmatpush1.msra.mxu0 %v1489
    %1541 = vmatprep.subr.mxu0 %v1492
    %1542 = vmatpush1.msra.mxu0 %v1491
    %1543 = vmatprep.subr.mxu0 %v1494
    %1544 = vmatpush1.msra.mxu0 %v1493
    %1545 = vmatprep.subr.mxu0 %v1496
    %1546 = vmatpush1.msra.mxu0 %v1495
    %1547 = vmatprep.subr.mxu0 %v1498
    %1548 = vmatpush1.msra.mxu0 %v1497
    %1549 = vmatprep.subr.mxu0 %v1500
    %1550 = vmatpush1.msra.mxu0 %v1499
    %1551 = vmatprep.subr.mxu0 %v1502
    %1552 = vmatpush1.msra.mxu0 %v1501
    %1553 = vmatprep.subr.mxu0 %v1504
    %1554 = vmatpush1.msra.mxu0 %v1503
    %1555 = vmatprep.subr.mxu0 %v1506
    %1556 = vmatpush1.msra.mxu0 %v1505
    %1557 = vmatprep.subr.mxu0 %v1508
    %1558 = vmatpush1.msra.mxu0 %v1507
    %1559 = vmatprep.subr.mxu0 %v1510
    %1560 = vmatpush1.msra.mxu0 %v1509
    %1561 = vmatprep.subr.mxu0 %v1512
    %1562 = vmatpush1.msra.mxu0 %v1511
    %1563 = vmatprep.subr.mxu0 %v1514
    %1564 = vmatpush1.msra.mxu0 %v1513
    %1565 = vmatprep.subr.mxu0 %v1516
    %1566 = vmatpush1.msra.mxu0 %v1515
    %1567 = vmatprep.subr.mxu0 %v1518
    %1568 = vmatpush1.msra.mxu0 %v1517
    %1569 = vmatprep.subr.mxu0 %v1520
    %1570 = vmatpush1.msra.mxu0 %v1519
    %1571 = vmatprep.subr.mxu0 %v1522
    %1572 = vmatpush1.msra.mxu0 %v1521
    %1573 = vmatprep.subr.mxu0 0.0
    %1574 = vmatpush1.msra.mxu0 0.0
    %1575 = vmatprep.subr.mxu0 0.0
    %1576 = vmatpush1.msra.mxu0 0.0
    %1577 = vmatprep.subr.mxu0 0.0
    %1578 = vmatpush1.msra.mxu0 0.0
    %1579 = vmatprep.subr.mxu0 0.0
    %1580 = vmatpush1.msra.mxu0 0.0
    %1581 = vmatprep.subr.mxu0 0.0
    %1582 = vmatpush1.msra.mxu0 0.0
    %1583 = vmatprep.subr.mxu0 0.0
    %1584 = vmatpush1.msra.mxu0 0.0
    %1585 = vmatprep.subr.mxu0 0.0
    %1586 = vmatpush1.msra.mxu0 0.0
    %1587 = vmatprep.subr.mxu0 0.0
    %1588 = vmatpush1.msra.mxu0 0.0
    %1589 = vmatprep.subr.mxu0 0.0
    %1590 = vmatpush1.msra.mxu0 0.0
    %1591 = vmatprep.subr.mxu0 0.0
    %1592 = vmatpush1.msra.mxu0 0.0
    %1593 = vmatprep.subr.mxu0 0.0
    %1594 = vmatpush1.msra.mxu0 0.0
    %1595 = vmatprep.subr.mxu0 0.0
    %1596 = vmatpush1.msra.mxu0 0.0
    %1597 = vmatprep.subr.mxu0 0.0
    %1598 = vmatpush1.msra.mxu0 0.0
    %1599 = vmatprep.subr.mxu0 0.0
    %1600 = vmatpush1.msra.mxu0 0.0
    %1601 = vmatprep.mubr.f32.mxu0 %v1524
    %1602 = vmatmul.mubr.f32.gmra.mrb[0].mxu0 %v1243
    %v1603 = vpop.f32.mrb[0].mxu0
    %v1604 = vadd.f32 0.0, %v1603
    %v1605 = vpop.f32.mrb[0].mxu0
    %v1606 = vadd.f32 0.0, %v1605
    %1607 = vmatprep.mubr.f32.mxu0 %v1527
    %1608 = vmatmul.mubr.f32.gmra.mrb[0].mxu0 %v1245
    %v1609 = vpop.f32.mrb[0].mxu0
    %v1610 = vadd.f32 0.0, %v1609
    %v1611 = vpop.f32.mrb[0].mxu0
    %v1612 = vadd.f32 0.0, %v1611
    %1613 = vmatprep.mubr.f32.mxu0 %v1530
    %1614 = vmatmul.mubr.f32.gmra.mrb[0].mxu0 %v1247
    %v1615 = vpop.f32.mrb[0].mxu0
    %v1616 = vadd.f32 0.0, %v1615
    %v1617 = vpop.f32.mrb[0].mxu0
    %v1618 = vadd.f32 0.0, %v1617
    %1619 = vmatprep.mubr.f32.mxu0 %v1533
    %1620 = vmatmul.mubr.f32.gmra.mrb[0].mxu0 %v1249
    %v1621 = vpop.f32.mrb[0].mxu0
    %v1622 = vadd.f32 0.0, %v1621
    %v1623 = vpop.f32.mrb[0].mxu0
    %v1624 = vadd.f32 0.0, %v1623
    %1625 = vmatprep.mubr.f32.mxu0 %v1535
    %1626 = vmatmul.mubr.f32.gmra.mrb[0].mxu0 %v1251
    %v1627 = vpop.f32.mrb[0].mxu0
    %v1628 = vadd.f32 0.0, %v1627
    %v1629 = vpop.f32.mrb[0].mxu0
    %v1630 = vadd.f32 0.0, %v1629
    %1631 = vdwg.mxu0
    %v1633 = vsel %vm778, %v1329, 0
    %v1636 = vsel %vm778, %v1335, 0
    %v1639 = vsel %vm778, %v1341, 0
    %v1642 = vsel %vm778, %v1347, 0
    %v1645 = vsel %vm778, %v1353, 0
    %1647 = vmatprep.subr.mxu0 %v1451
    %1648 = vmatpush1.msra.mxu0 %v1450
    %1649 = vmatprep.subr.mxu0 %v1453
    %1650 = vmatpush1.msra.mxu0 %v1452
    %1651 = vmatprep.subr.mxu0 %v1455
    %1652 = vmatpush1.msra.mxu0 %v1454
    %1653 = vmatprep.subr.mxu0 %v1457
    %1654 = vmatpush1.msra.mxu0 %v1456
    %1655 = vmatprep.subr.mxu0 %v1459
    %1656 = vmatpush1.msra.mxu0 %v1458
    %1657 = vmatprep.subr.mxu0 %v1461
    %1658 = vmatpush1.msra.mxu0 %v1460
    %1659 = vmatprep.subr.mxu0 %v1463
    %1660 = vmatpush1.msra.mxu0 %v1462
    %1661 = vmatprep.subr.mxu0 %v1465
    %1662 = vmatpush1.msra.mxu0 %v1464
    %1663 = vmatprep.subr.mxu0 %v1467
    %1664 = vmatpush1.msra.mxu0 %v1466
    %1665 = vmatprep.subr.mxu0 %v1469
    %1666 = vmatpush1.msra.mxu0 %v1468
    %1667 = vmatprep.subr.mxu0 %v1471
    %1668 = vmatpush1.msra.mxu0 %v1470
    %1669 = vmatprep.subr.mxu0 %v1473
    %1670 = vmatpush1.msra.mxu0 %v1472
    %1671 = vmatprep.subr.mxu0 %v1475
    %1672 = vmatpush1.msra.mxu0 %v1474
    %1673 = vmatprep.subr.mxu0 %v1477
    %1674 = vmatpush1.msra.mxu0 %v1476
    %1675 = vmatprep.subr.mxu0 %v1479
    %1676 = vmatpush1.msra.mxu0 %v1478
    %1677 = vmatprep.subr.mxu0 %v1481
    %1678 = vmatpush1.msra.mxu0 %v1480
    %1679 = vmatprep.subr.mxu0 %v1483
    %1680 = vmatpush1.msra.mxu0 %v1482
    %1681 = vmatprep.subr.mxu0 %v1485
    %1682 = vmatpush1.msra.mxu0 %v1484
    %1683 = vmatprep.subr.mxu0 0.0
    %1684 = vmatpush1.msra.mxu0 0.0
    %1685 = vmatprep.subr.mxu0 0.0
    %1686 = vmatpush1.msra.mxu0 0.0
    %1687 = vmatprep.subr.mxu0 0.0
    %1688 = vmatpush1.msra.mxu0 0.0
    %1689 = vmatprep.subr.mxu0 0.0
    %1690 = vmatpush1.msra.mxu0 0.0
    %1691 = vmatprep.subr.mxu0 0.0
    %1692 = vmatpush1.msra.mxu0 0.0
    %1693 = vmatprep.subr.mxu0 0.0
    %1694 = vmatpush1.msra.mxu0 0.0
    %1695 = vmatprep.subr.mxu0 0.0
    %1696 = vmatpush1.msra.mxu0 0.0
    %1697 = vmatprep.subr.mxu0 0.0
    %1698 = vmatpush1.msra.mxu0 0.0
    %1699 = vmatprep.subr.mxu0 0.0
    %1700 = vmatpush1.msra.mxu0 0.0
    %1701 = vmatprep.subr.mxu0 0.0
    %1702 = vmatpush1.msra.mxu0 0.0
    %1703 = vmatprep.subr.mxu0 0.0
    %1704 = vmatpush1.msra.mxu0 0.0
    %1705 = vmatprep.subr.mxu0 0.0
    %1706 = vmatpush1.msra.mxu0 0.0
    %1707 = vmatprep.subr.mxu0 0.0
    %1708 = vmatpush1.msra.mxu0 0.0
    %1709 = vmatprep.subr.mxu0 0.0
    %1710 = vmatpush1.msra.mxu0 0.0
    %1711 = vmatprep.mubr.f32.mxu0 %v1633
    %1712 = vmatmul.mubr.f32.gmra.mrb[0].mxu0 %v1327
    %v1713 = vpop.f32.mrb[0].mxu0
    %v1714 = vadd.f32 %v1604, %v1713
    %v1715 = vpop.f32.mrb[0].mxu0
    %v1716 = vadd.f32 %v1606, %v1715
    %1717 = vmatprep.mubr.f32.mxu0 %v1636
    %1718 = vmatmul.mubr.f32.gmra.mrb[0].mxu0 %v1333
    %v1719 = vpop.f32.mrb[0].mxu0
    %v1720 = vadd.f32 %v1610, %v1719
    %v1721 = vpop.f32.mrb[0].mxu0
    %v1722 = vadd.f32 %v1612, %v1721
    %1723 = vmatprep.mubr.f32.mxu0 %v1639
    %1724 = vmatmul.mubr.f32.gmra.mrb[0].mxu0 %v1339
    %v1725 = vpop.f32.mrb[0].mxu0
    %v1726 = vadd.f32 %v1616, %v1725
    %v1727 = vpop.f32.mrb[0].mxu0
    %v1728 = vadd.f32 %v1618, %v1727
    %1729 = vmatprep.mubr.f32.mxu0 %v1642
    %1730 = vmatmul.mubr.f32.gmra.mrb[0].mxu0 %v1345
    %v1731 = vpop.f32.mrb[0].mxu0
    %v1732 = vadd.f32 %v1622, %v1731
    %v1733 = vpop.f32.mrb[0].mxu0
    %v1734 = vadd.f32 %v1624, %v1733
    %1735 = vmatprep.mubr.f32.mxu0 %v1645
    %1736 = vmatmul.mubr.f32.gmra.mrb[0].mxu0 %v1351
    %v1737 = vpop.f32.mrb[0].mxu0
    %v1738 = vadd.f32 %v1628, %v1737
    %v1739 = vpop.f32.mrb[0].mxu0
    %v1740 = vadd.f32 %v1630, %v1739
    %1741 = vdwg.mxu0
    %s1742 = scalar_lea.vmem [#allocation5], 576
    %v1743 = vld [vmem:[%s1742] sm:$0xff]
    %v1744 = vld [vmem:[%s1742 + $0x8] sm:$0xff]
    %v1745 = vld [vmem:[%s1742 + $0x10] sm:$0xff]
    %v1746 = vld [vmem:[%s1742 + $0x18] sm:$0xff]
    %v1747 = vld [vmem:[%s1742 + $0x20] sm:$0xff]
    %v1748 = vld [vmem:[%s1742 + $0x28] sm:$0xff]
    %v1749 = vld [vmem:[%s1742 + $0x30] sm:$0xff]
    %v1750 = vld [vmem:[%s1742 + $0x38] sm:$0xff]
    %v1751 = vld [vmem:[%s1742 + $0x40] sm:$0xff]
    %v1752 = vld [vmem:[%s1742 + $0x48] sm:$0xff]
    %v1753 = vld [vmem:[%s1742 + $0x50] sm:$0xff]
    %v1754 = vld [vmem:[%s1742 + $0x58] sm:$0xff]
    %v1755 = vld [vmem:[%s1742 + $0x60] sm:$0xff]
    %v1756 = vld [vmem:[%s1742 + $0x68] sm:$0xff]
    %v1757 = vld [vmem:[%s1742 + $0x70] sm:$0xff]
    %v1758 = vld [vmem:[%s1742 + $0x78] sm:$0xff]
    %v1759 = vld [vmem:[%s1742 + $0x80] sm:$0xff]
    %v1760 = vld [vmem:[%s1742 + $0x88] sm:$0xff]
    %v1761 = vld [vmem:[%s1742 + $0x90] sm:$0xff]
    %v1762 = vld [vmem:[%s1742 + $0x98] sm:$0xff]
    %v1763 = vld [vmem:[%s1742 + $0xa0] sm:$0xff]
    %v1764 = vld [vmem:[%s1742 + $0xa8] sm:$0xff]
    %v1765 = vld [vmem:[%s1742 + $0xb0] sm:$0xff]
    %v1766 = vld [vmem:[%s1742 + $0xb8] sm:$0xff]
    %v1767 = vld [vmem:[%s1742 + $0xc0] sm:$0xff]
    %v1768 = vld [vmem:[%s1742 + $0xc8] sm:$0xff]
    %v1769 = vld [vmem:[%s1742 + $0xd0] sm:$0xff]
    %v1770 = vld [vmem:[%s1742 + $0xd8] sm:$0xff]
    %v1771 = vld [vmem:[%s1742 + $0xe0] sm:$0xff]
    %v1772 = vld [vmem:[%s1742 + $0xe8] sm:$0xff]
    %v1773 = vld [vmem:[%s1742 + $0xf0] sm:$0xff]
    %v1774 = vld [vmem:[%s1742 + $0xf8] sm:$0xff]
    %v1775 = vld [vmem:[%s1742 + $0x100] sm:$0xff]
    %v1776 = vld [vmem:[%s1742 + $0x108] sm:$0xff]
    %v1777 = vld [vmem:[%s1742 + $0x110] sm:$0xff]
    %v1778 = vld [vmem:[%s1742 + $0x118] sm:$0xff]
    %v1780 = vsel %vm778, %v1424, 0
    %v1783 = vsel %vm778, %v1430, 0
    %v1786 = vsel %vm778, %v1436, 0
    %v1789 = vsel %vm778, %v1442, 0
    %v1792 = vsel %vm778, %v1448, 0
    %1794 = vmatprep.subr.mxu0 %v1744
    %1795 = vmatpush1.msra.mxu0 %v1743
    %1796 = vmatprep.subr.mxu0 %v1746
    %1797 = vmatpush1.msra.mxu0 %v1745
    %1798 = vmatprep.subr.mxu0 %v1748
    %1799 = vmatpush1.msra.mxu0 %v1747
    %1800 = vmatprep.subr.mxu0 %v1750
    %1801 = vmatpush1.msra.mxu0 %v1749
    %1802 = vmatprep.subr.mxu0 %v1752
    %1803 = vmatpush1.msra.mxu0 %v1751
    %1804 = vmatprep.subr.mxu0 %v1754
    %1805 = vmatpush1.msra.mxu0 %v1753
    %1806 = vmatprep.subr.mxu0 %v1756
    %1807 = vmatpush1.msra.mxu0 %v1755
    %1808 = vmatprep.subr.mxu0 %v1758
    %1809 = vmatpush1.msra.mxu0 %v1757
    %1810 = vmatprep.subr.mxu0 %v1760
    %1811 = vmatpush1.msra.mxu0 %v1759
    %1812 = vmatprep.subr.mxu0 %v1762
    %1813 = vmatpush1.msra.mxu0 %v1761
    %1814 = vmatprep.subr.mxu0 %v1764
    %1815 = vmatpush1.msra.mxu0 %v1763
    %1816 = vmatprep.subr.mxu0 %v1766
    %1817 = vmatpush1.msra.mxu0 %v1765
    %1818 = vmatprep.subr.mxu0 %v1768
    %1819 = vmatpush1.msra.mxu0 %v1767
    %1820 = vmatprep.subr.mxu0 %v1770
    %1821 = vmatpush1.msra.mxu0 %v1769
    %1822 = vmatprep.subr.mxu0 %v1772
    %1823 = vmatpush1.msra.mxu0 %v1771
    %1824 = vmatprep.subr.mxu0 %v1774
    %1825 = vmatpush1.msra.mxu0 %v1773
    %1826 = vmatprep.subr.mxu0 %v1776
    %1827 = vmatpush1.msra.mxu0 %v1775
    %1828 = vmatprep.subr.mxu0 %v1778
    %1829 = vmatpush1.msra.mxu0 %v1777
    %1830 = vmatprep.subr.mxu0 0.0
    %1831 = vmatpush1.msra.mxu0 0.0
    %1832 = vmatprep.subr.mxu0 0.0
    %1833 = vmatpush1.msra.mxu0 0.0
    %1834 = vmatprep.subr.mxu0 0.0
    %1835 = vmatpush1.msra.mxu0 0.0
    %1836 = vmatprep.subr.mxu0 0.0
    %1837 = vmatpush1.msra.mxu0 0.0
    %1838 = vmatprep.subr.mxu0 0.0
    %1839 = vmatpush1.msra.mxu0 0.0
    %1840 = vmatprep.subr.mxu0 0.0
    %1841 = vmatpush1.msra.mxu0 0.0
    %1842 = vmatprep.subr.mxu0 0.0
    %1843 = vmatpush1.msra.mxu0 0.0
    %1844 = vmatprep.subr.mxu0 0.0
    %1845 = vmatpush1.msra.mxu0 0.0
    %1846 = vmatprep.subr.mxu0 0.0
    %1847 = vmatpush1.msra.mxu0 0.0
    %1848 = vmatprep.subr.mxu0 0.0
    %1849 = vmatpush1.msra.mxu0 0.0
    %1850 = vmatprep.subr.mxu0 0.0
    %1851 = vmatpush1.msra.mxu0 0.0
    %1852 = vmatprep.subr.mxu0 0.0
    %1853 = vmatpush1.msra.mxu0 0.0
    %1854 = vmatprep.subr.mxu0 0.0
    %1855 = vmatpush1.msra.mxu0 0.0
    %1856 = vmatprep.subr.mxu0 0.0
    %1857 = vmatpush1.msra.mxu0 0.0
    %1858 = vmatprep.mubr.f32.mxu0 %v1780
    %1859 = vmatmul.mubr.f32.gmra.mrb[0].mxu0 %v1422
    %v1860 = vpop.f32.mrb[0].mxu0
    %v1861 = vadd.f32 0.0, %v1860
    %v1862 = vpop.f32.mrb[0].mxu0
    %v1863 = vadd.f32 0.0, %v1862
    %1864 = vmatprep.mubr.f32.mxu0 %v1783
    %1865 = vmatmul.mubr.f32.gmra.mrb[0].mxu0 %v1428
    %v1866 = vpop.f32.mrb[0].mxu0
    %v1867 = vadd.f32 0.0, %v1866
    %v1868 = vpop.f32.mrb[0].mxu0
    %v1869 = vadd.f32 0.0, %v1868
    %1870 = vmatprep.mubr.f32.mxu0 %v1786
    %1871 = vmatmul.mubr.f32.gmra.mrb[0].mxu0 %v1434
    %v1872 = vpop.f32.mrb[0].mxu0
    %v1873 = vadd.f32 0.0, %v1872
    %v1874 = vpop.f32.mrb[0].mxu0
    %v1875 = vadd.f32 0.0, %v1874
    %1876 = vmatprep.mubr.f32.mxu0 %v1789
    %1877 = vmatmul.mubr.f32.gmra.mrb[0].mxu0 %v1440
    %v1878 = vpop.f32.mrb[0].mxu0
    %v1879 = vadd.f32 0.0, %v1878
    %v1880 = vpop.f32.mrb[0].mxu0
    %v1881 = vadd.f32 0.0, %v1880
    %1882 = vmatprep.mubr.f32.mxu0 %v1792
    %1883 = vmatmul.mubr.f32.gmra.mrb[0].mxu0 %v1446
    %v1884 = vpop.f32.mrb[0].mxu0
    %v1885 = vadd.f32 0.0, %v1884
    %v1886 = vpop.f32.mrb[0].mxu0
    %v1887 = vadd.f32 0.0, %v1886
    %1888 = vdwg.mxu0
    %v1889 = vadd.f32 %v1714, %v1861
    %v1890 = vadd.f32 %v1716, %v1863
    %v1891 = vadd.f32 %v1720, %v1867
    %v1892 = vadd.f32 %v1722, %v1869
    %v1893 = vadd.f32 %v1726, %v1873
    %v1894 = vadd.f32 %v1728, %v1875
    %v1895 = vadd.f32 %v1732, %v1879
    %v1896 = vadd.f32 %v1734, %v1881
    %v1897 = vadd.f32 %v1738, %v1885
    %v1898 = vadd.f32 %v1740, %v1887
    %v1900 = vlaneseq
    %v1901 = vshrl.u32 %v1900, 7
    %v1902 = vsub.s32 0, %v1901
    %v1903 = vrot.slane %v1253, %v1902
    %v1904 = vlaneseq
    %v1905 = vshrl.u32 %v1904, 7
    %v1906 = vsub.s32 1, %v1905
    %v1907 = vrot.slane %v1253, %v1906
    %v1910 = vadd.f32 %v1889, %v1903
    %v1911 = vadd.f32 %v1890, %v1907
    %v1912 = vadd.f32 %v1891, %v1903
    %v1913 = vadd.f32 %v1892, %v1907
    %v1914 = vadd.f32 %v1893, %v1903
    %v1915 = vadd.f32 %v1894, %v1907
    %v1916 = vadd.f32 %v1895, %v1903
    %v1917 = vadd.f32 %v1896, %v1907
    %v1918 = vadd.f32 %v1897, %v1903
    %v1919 = vadd.f32 %v1898, %v1907
    %v1920 = vmul.f32 %v1910, %v746
    %v1921 = vmul.f32 %v1911, %v746
    %v1922 = vmul.f32 %v1912, %v751
    %v1923 = vmul.f32 %v1913, %v751
    %v1924 = vmul.f32 %v1914, %v756
    %v1925 = vmul.f32 %v1915, %v756
    %v1926 = vmul.f32 %v1916, %v761
    %v1927 = vmul.f32 %v1917, %v761
    %v1928 = vmul.f32 %v1918, %v766
    %v1929 = vmul.f32 %v1919, %v766
    %v1931 = vsel %vm778, %v1921, 0
    %v1934 = vsel %vm778, %v1923, 0
    %v1937 = vsel %vm778, %v1925, 0
    %v1940 = vsel %vm778, %v1927, 0
    %v1943 = vsel %vm778, %v1929, 0
    %1945 = vmatprep.subr.mxu0 0.0
    %1946 = vmatpush1.msra.mxu0 %v67
    %1947 = vmatprep.subr.mxu0 0.0
    %1948 = vmatpush1.msra.mxu0 %v68
    %1949 = vmatprep.subr.mxu0 0.0
    %1950 = vmatpush1.msra.mxu0 %v69
    %1951 = vmatprep.subr.mxu0 0.0
    %1952 = vmatpush1.msra.mxu0 %v70
    %1953 = vmatprep.subr.mxu0 0.0
    %1954 = vmatpush1.msra.mxu0 %v71
    %1955 = vmatprep.subr.mxu0 0.0
    %1956 = vmatpush1.msra.mxu0 %v72
    %1957 = vmatprep.subr.mxu0 0.0
    %1958 = vmatpush1.msra.mxu0 %v73
    %1959 = vmatprep.subr.mxu0 0.0
    %1960 = vmatpush1.msra.mxu0 %v74
    %1961 = vmatprep.subr.mxu0 0.0
    %1962 = vmatpush1.msra.mxu0 %v75
    %1963 = vmatprep.subr.mxu0 0.0
    %1964 = vmatpush1.msra.mxu0 %v76
    %1965 = vmatprep.subr.mxu0 0.0
    %1966 = vmatpush1.msra.mxu0 %v77
    %1967 = vmatprep.subr.mxu0 0.0
    %1968 = vmatpush1.msra.mxu0 %v78
    %1969 = vmatprep.subr.mxu0 0.0
    %1970 = vmatpush1.msra.mxu0 %v79
    %1971 = vmatprep.subr.mxu0 0.0
    %1972 = vmatpush1.msra.mxu0 %v80
    %1973 = vmatprep.subr.mxu0 0.0
    %1974 = vmatpush1.msra.mxu0 %v81
    %1975 = vmatprep.subr.mxu0 0.0
    %1976 = vmatpush1.msra.mxu0 %v82
    %1977 = vmatprep.subr.mxu0 0.0
    %1978 = vmatpush1.msra.mxu0 %v83
    %1979 = vmatprep.subr.mxu0 0.0
    %1980 = vmatpush1.msra.mxu0 %v84
    %1981 = vmatprep.subr.mxu0 0.0
    %1982 = vmatpush1.msra.mxu0 0.0
    %1983 = vmatprep.subr.mxu0 0.0
    %1984 = vmatpush1.msra.mxu0 0.0
    %1985 = vmatprep.subr.mxu0 0.0
    %1986 = vmatpush1.msra.mxu0 0.0
    %1987 = vmatprep.subr.mxu0 0.0
    %1988 = vmatpush1.msra.mxu0 0.0
    %1989 = vmatprep.subr.mxu0 0.0
    %1990 = vmatpush1.msra.mxu0 0.0
    %1991 = vmatprep.subr.mxu0 0.0
    %1992 = vmatpush1.msra.mxu0 0.0
    %1993 = vmatprep.subr.mxu0 0.0
    %1994 = vmatpush1.msra.mxu0 0.0
    %1995 = vmatprep.subr.mxu0 0.0
    %1996 = vmatpush1.msra.mxu0 0.0
    %1997 = vmatprep.subr.mxu0 0.0
    %1998 = vmatpush1.msra.mxu0 0.0
    %1999 = vmatprep.subr.mxu0 0.0
    %2000 = vmatpush1.msra.mxu0 0.0
    %2001 = vmatprep.subr.mxu0 0.0
    %2002 = vmatpush1.msra.mxu0 0.0
    %2003 = vmatprep.subr.mxu0 0.0
    %2004 = vmatpush1.msra.mxu0 0.0
    %2005 = vmatprep.subr.mxu0 0.0
    %2006 = vmatpush1.msra.mxu0 0.0
    %2007 = vmatprep.subr.mxu0 0.0
    %2008 = vmatpush1.msra.mxu0 0.0
    %2009 = vmatprep.mubr.f32.mxu0 %v1931
    %2010 = vmatmul.mubr.f32.gmra.mrb[0].mxu0 %v1920
    %v2011 = vpop.f32.mrb[0].mxu0
    %v2012 = vadd.f32 0.0, %v2011
    %v2013 = vpop.f32.mrb[0].mxu0
    %2014 = vmatprep.mubr.f32.mxu0 %v1934
    %2015 = vmatmul.mubr.f32.gmra.mrb[0].mxu0 %v1922
    %v2016 = vpop.f32.mrb[0].mxu0
    %v2017 = vadd.f32 0.0, %v2016
    %v2018 = vpop.f32.mrb[0].mxu0
    %2019 = vmatprep.mubr.f32.mxu0 %v1937
    %2020 = vmatmul.mubr.f32.gmra.mrb[0].mxu0 %v1924
    %v2021 = vpop.f32.mrb[0].mxu0
    %v2022 = vadd.f32 0.0, %v2021
    %v2023 = vpop.f32.mrb[0].mxu0
    %2024 = vmatprep.mubr.f32.mxu0 %v1940
    %2025 = vmatmul.mubr.f32.gmra.mrb[0].mxu0 %v1926
    %v2026 = vpop.f32.mrb[0].mxu0
    %v2027 = vadd.f32 0.0, %v2026
    %v2028 = vpop.f32.mrb[0].mxu0
    %2029 = vmatprep.mubr.f32.mxu0 %v1943
    %2030 = vmatmul.mubr.f32.gmra.mrb[0].mxu0 %v1928
    %v2031 = vpop.f32.mrb[0].mxu0
    %v2032 = vadd.f32 0.0, %v2031
    %v2033 = vpop.f32.mrb[0].mxu0
    %2034 = vdwg.mxu0
    %v2035 = vsel %vm884, %v2012, 0.0
    %v2036 = vsel %vm884, %v2017, 0.0
    %v2037 = vadd.f32 %v2035, %v2036
    %v2038 = vsel %vm884, %v2022, 0.0
    %v2039 = vadd.f32 %v2037, %v2038
    %v2040 = vsel %vm884, %v2027, 0.0
    %v2041 = vadd.f32 %v2039, %v2040
    %v2042 = vsel %vm892, %v2032, 0.0
    %v2043 = vadd.f32 %v2041, %v2042
    %v2044 = vrot.slane %v2043, 4
    %v2045 = vadd.f32 %v2043, %v2044
    %v2046 = vrot.slane %v2045, 2
    %v2047 = vadd.f32 %v2045, %v2046
    %v2048 = vrot.slane %v2047, 1
    %v2049 = vadd.f32 %v2047, %v2048
    %v2050 = vmul.f32 %v1920, %v1920
    %v2051 = vmul.f32 %v1921, %v1921
    %v2052 = vmul.f32 %v1922, %v1922
    %v2053 = vmul.f32 %v1923, %v1923
    %v2054 = vmul.f32 %v1924, %v1924
    %v2055 = vmul.f32 %v1925, %v1925
    %v2056 = vmul.f32 %v1926, %v1926
    %v2057 = vmul.f32 %v1927, %v1927
    %v2058 = vmul.f32 %v1928, %v1928
    %v2059 = vmul.f32 %v1929, %v1929
    %v2061 = vsel %vm778, %v2051, 0
    %v2064 = vsel %vm778, %v2053, 0
    %v2067 = vsel %vm778, %v2055, 0
    %v2070 = vsel %vm778, %v2057, 0
    %v2073 = vsel %vm778, %v2059, 0
    %2075 = vmatprep.subr.mxu0 0.0
    %2076 = vmatpush1.msra.mxu0 %v67
    %2077 = vmatprep.subr.mxu0 0.0
    %2078 = vmatpush1.msra.mxu0 %v68
    %2079 = vmatprep.subr.mxu0 0.0
    %2080 = vmatpush1.msra.mxu0 %v69
    %2081 = vmatprep.subr.mxu0 0.0
    %2082 = vmatpush1.msra.mxu0 %v70
    %2083 = vmatprep.subr.mxu0 0.0
    %2084 = vmatpush1.msra.mxu0 %v71
    %2085 = vmatprep.subr.mxu0 0.0
    %2086 = vmatpush1.msra.mxu0 %v72
    %2087 = vmatprep.subr.mxu0 0.0
    %2088 = vmatpush1.msra.mxu0 %v73
    %2089 = vmatprep.subr.mxu0 0.0
    %2090 = vmatpush1.msra.mxu0 %v74
    %2091 = vmatprep.subr.mxu0 0.0
    %2092 = vmatpush1.msra.mxu0 %v75
    %2093 = vmatprep.subr.mxu0 0.0
    %2094 = vmatpush1.msra.mxu0 %v76
    %2095 = vmatprep.subr.mxu0 0.0
    %2096 = vmatpush1.msra.mxu0 %v77
    %2097 = vmatprep.subr.mxu0 0.0
    %2098 = vmatpush1.msra.mxu0 %v78
    %2099 = vmatprep.subr.mxu0 0.0
    %2100 = vmatpush1.msra.mxu0 %v79
    %2101 = vmatprep.subr.mxu0 0.0
    %2102 = vmatpush1.msra.mxu0 %v80
    %2103 = vmatprep.subr.mxu0 0.0
    %2104 = vmatpush1.msra.mxu0 %v81
    %2105 = vmatprep.subr.mxu0 0.0
    %2106 = vmatpush1.msra.mxu0 %v82
    %2107 = vmatprep.subr.mxu0 0.0
    %2108 = vmatpush1.msra.mxu0 %v83
    %2109 = vmatprep.subr.mxu0 0.0
    %2110 = vmatpush1.msra.mxu0 %v84
    %2111 = vmatprep.subr.mxu0 0.0
    %2112 = vmatpush1.msra.mxu0 0.0
    %2113 = vmatprep.subr.mxu0 0.0
    %2114 = vmatpush1.msra.mxu0 0.0
    %2115 = vmatprep.subr.mxu0 0.0
    %2116 = vmatpush1.msra.mxu0 0.0
    %2117 = vmatprep.subr.mxu0 0.0
    %2118 = vmatpush1.msra.mxu0 0.0
    %2119 = vmatprep.subr.mxu0 0.0
    %2120 = vmatpush1.msra.mxu0 0.0
    %2121 = vmatprep.subr.mxu0 0.0
    %2122 = vmatpush1.msra.mxu0 0.0
    %2123 = vmatprep.subr.mxu0 0.0
    %2124 = vmatpush1.msra.mxu0 0.0
    %2125 = vmatprep.subr.mxu0 0.0
    %2126 = vmatpush1.msra.mxu0 0.0
    %2127 = vmatprep.subr.mxu0 0.0
    %2128 = vmatpush1.msra.mxu0 0.0
    %2129 = vmatprep.subr.mxu0 0.0
    %2130 = vmatpush1.msra.mxu0 0.0
    %2131 = vmatprep.subr.mxu0 0.0
    %2132 = vmatpush1.msra.mxu0 0.0
    %2133 = vmatprep.subr.mxu0 0.0
    %2134 = vmatpush1.msra.mxu0 0.0
    %2135 = vmatprep.subr.mxu0 0.0
    %2136 = vmatpush1.msra.mxu0 0.0
    %2137 = vmatprep.subr.mxu0 0.0
    %2138 = vmatpush1.msra.mxu0 0.0
    %2139 = vmatprep.mubr.f32.mxu0 %v2061
    %2140 = vmatmul.mubr.f32.gmra.mrb[0].mxu0 %v2050
    %v2141 = vpop.f32.mrb[0].mxu0
    %v2142 = vadd.f32 0.0, %v2141
    %v2143 = vpop.f32.mrb[0].mxu0
    %2144 = vmatprep.mubr.f32.mxu0 %v2064
    %2145 = vmatmul.mubr.f32.gmra.mrb[0].mxu0 %v2052
    %v2146 = vpop.f32.mrb[0].mxu0
    %v2147 = vadd.f32 0.0, %v2146
    %v2148 = vpop.f32.mrb[0].mxu0
    %2149 = vmatprep.mubr.f32.mxu0 %v2067
    %2150 = vmatmul.mubr.f32.gmra.mrb[0].mxu0 %v2054
    %v2151 = vpop.f32.mrb[0].mxu0
    %v2152 = vadd.f32 0.0, %v2151
    %v2153 = vpop.f32.mrb[0].mxu0
    %2154 = vmatprep.mubr.f32.mxu0 %v2070
    %2155 = vmatmul.mubr.f32.gmra.mrb[0].mxu0 %v2056
    %v2156 = vpop.f32.mrb[0].mxu0
    %v2157 = vadd.f32 0.0, %v2156
    %v2158 = vpop.f32.mrb[0].mxu0
    %2159 = vmatprep.mubr.f32.mxu0 %v2073
    %2160 = vmatmul.mubr.f32.gmra.mrb[0].mxu0 %v2058
    %v2161 = vpop.f32.mrb[0].mxu0
    %v2162 = vadd.f32 0.0, %v2161
    %v2163 = vpop.f32.mrb[0].mxu0
    %2164 = vdwg.mxu0
    %v2165 = vsel %vm884, %v2142, 0.0
    %v2166 = vsel %vm884, %v2147, 0.0
    %v2167 = vadd.f32 %v2165, %v2166
    %v2168 = vsel %vm884, %v2152, 0.0
    %v2169 = vadd.f32 %v2167, %v2168
    %v2170 = vsel %vm884, %v2157, 0.0
    %v2171 = vadd.f32 %v2169, %v2170
    %v2172 = vsel %vm892, %v2162, 0.0
    %v2173 = vadd.f32 %v2171, %v2172
    %v2174 = vrot.slane %v2173, 4
    %v2175 = vadd.f32 %v2173, %v2174
    %v2176 = vrot.slane %v2175, 2
    %v2177 = vadd.f32 %v2175, %v2176
    %v2178 = vrot.slane %v2177, 1
    %v2179 = vadd.f32 %v2177, %v2178
    %v2180 = vmul.f32 %v2049, %v1031
    %v2181 = vmul.f32 %v2179, %v1031
    %v2182 = vmul.f32 %v2180, %v2180
    %v2183 = vsub.f32 %v2181, %v2182
    %v2184 = vadd.f32 %v2183, 1e-05
    %v2185 = vrsqrt.pop %v2184
    %v2186 = vmul.f32 %v2185, %v92
    %v2187 = vmul.f32 %v2180, %v2186
    %v2188 = vsub.f32 %v93, %v2187
    %v2189 = vlaneseq
    %v2190 = vshrl.u32 %v2189, 7
    %v2191 = vsub.s32 0, %v2190
    %v2192 = vrot.slane %v2186, %v2191
    %v2194 = vsel %vm884, %v2192, 0
    %2196 = vmatprep.subr.mxu0 %v86
    %2197 = vmatpush1.msra.mxu0 %v85
    %2198 = vmatprep.subr.mxu0 0.0
    %2199 = vmatpush1.msra.mxu0 0.0
    %2200 = vmatprep.subr.mxu0 0.0
    %2201 = vmatpush1.msra.mxu0 0.0
    %2202 = vmatprep.subr.mxu0 0.0
    %2203 = vmatpush1.msra.mxu0 0.0
    %2204 = vmatprep.subr.mxu0 0.0
    %2205 = vmatpush1.msra.mxu0 0.0
    %2206 = vmatprep.subr.mxu0 0.0
    %2207 = vmatpush1.msra.mxu0 0.0
    %2208 = vmatprep.subr.mxu0 0.0
    %2209 = vmatpush1.msra.mxu0 0.0
    %2210 = vmatprep.subr.mxu0 0.0
    %2211 = vmatpush1.msra.mxu0 0.0
    %2212 = vmatprep.subr.mxu0 0.0
    %2213 = vmatpush1.msra.mxu0 0.0
    %2214 = vmatprep.subr.mxu0 0.0
    %2215 = vmatpush1.msra.mxu0 0.0
    %2216 = vmatprep.subr.mxu0 0.0
    %2217 = vmatpush1.msra.mxu0 0.0
    %2218 = vmatprep.subr.mxu0 0.0
    %2219 = vmatpush1.msra.mxu0 0.0
    %2220 = vmatprep.subr.mxu0 0.0
    %2221 = vmatpush1.msra.mxu0 0.0
    %2222 = vmatprep.subr.mxu0 0.0
    %2223 = vmatpush1.msra.mxu0 0.0
    %2224 = vmatprep.subr.mxu0 0.0
    %2225 = vmatpush1.msra.mxu0 0.0
    %2226 = vmatprep.subr.mxu0 0.0
    %2227 = vmatpush1.msra.mxu0 0.0
    %2228 = vmatprep.subr.mxu0 0.0
    %2229 = vmatpush1.msra.mxu0 0.0
    %2230 = vmatprep.subr.mxu0 0.0
    %2231 = vmatpush1.msra.mxu0 0.0
    %2232 = vmatprep.subr.mxu0 0.0
    %2233 = vmatpush1.msra.mxu0 0.0
    %2234 = vmatprep.subr.mxu0 0.0
    %2235 = vmatpush1.msra.mxu0 0.0
    %2236 = vmatprep.subr.mxu0 0.0
    %2237 = vmatpush1.msra.mxu0 0.0
    %2238 = vmatprep.subr.mxu0 0.0
    %2239 = vmatpush1.msra.mxu0 0.0
    %2240 = vmatprep.subr.mxu0 0.0
    %2241 = vmatpush1.msra.mxu0 0.0
    %2242 = vmatprep.subr.mxu0 0.0
    %2243 = vmatpush1.msra.mxu0 0.0
    %2244 = vmatprep.subr.mxu0 0.0
    %2245 = vmatpush1.msra.mxu0 0.0
    %2246 = vmatprep.subr.mxu0 0.0
    %2247 = vmatpush1.msra.mxu0 0.0
    %2248 = vmatprep.subr.mxu0 0.0
    %2249 = vmatpush1.msra.mxu0 0.0
    %2250 = vmatprep.subr.mxu0 0.0
    %2251 = vmatpush1.msra.mxu0 0.0
    %2252 = vmatprep.subr.mxu0 0.0
    %2253 = vmatpush1.msra.mxu0 0.0
    %2254 = vmatprep.subr.mxu0 0.0
    %2255 = vmatpush1.msra.mxu0 0.0
    %2256 = vmatprep.subr.mxu0 0.0
    %2257 = vmatpush1.msra.mxu0 0.0
    %2258 = vmatprep.subr.mxu0 0.0
    %2259 = vmatpush1.msra.mxu0 0.0
    %2260 = vmatprep.mubr.f32.mxu0 0.0
    %2261 = vmatmul.mubr.f32.gmra.mrb[0].mxu0 %v2194
    %v2262 = vpop.f32.mrb[0].mxu0
    %v2263 = vadd.f32 0.0, %v2262
    %v2264 = vpop.f32.mrb[0].mxu0
    %v2265 = vadd.f32 0.0, %v2264
    %2266 = vdwg.mxu0
    %v2267 = vlaneseq
    %v2268 = vshrl.u32 %v2267, 7
    %v2269 = vsub.s32 0, %v2268
    %v2270 = vrot.slane %v2263, %v2269
    %v2271 = vlaneseq
    %v2272 = vshrl.u32 %v2271, 7
    %v2273 = vsub.s32 0, %v2272
    %v2274 = vrot.slane %v2265, %v2273
    %v2275 = vmul.f32 %v1920, %v2270
    %v2276 = vmul.f32 %v1921, %v2274
    %v2277 = vmul.f32 %v1922, %v2270
    %v2278 = vmul.f32 %v1923, %v2274
    %v2279 = vmul.f32 %v1924, %v2270
    %v2280 = vmul.f32 %v1925, %v2274
    %v2281 = vmul.f32 %v1926, %v2270
    %v2282 = vmul.f32 %v1927, %v2274
    %v2283 = vmul.f32 %v1928, %v2270
    %v2284 = vmul.f32 %v1929, %v2274
    %v2286 = vlaneseq
    %v2287 = vshrl.u32 %v2286, 7
    %v2288 = vsub.s32 0, %v2287
    %v2289 = vrot.slane %v2188, %v2288
    %v2290 = vsel %vm884, %v2289, 0
    %2292 = vmatprep.subr.mxu0 %v86
    %2293 = vmatpush1.msra.mxu0 %v85
    %2294 = vmatprep.subr.mxu0 0.0
    %2295 = vmatpush1.msra.mxu0 0.0
    %2296 = vmatprep.subr.mxu0 0.0
    %2297 = vmatpush1.msra.mxu0 0.0
    %2298 = vmatprep.subr.mxu0 0.0
    %2299 = vmatpush1.msra.mxu0 0.0
    %2300 = vmatprep.subr.mxu0 0.0
    %2301 = vmatpush1.msra.mxu0 0.0
    %2302 = vmatprep.subr.mxu0 0.0
    %2303 = vmatpush1.msra.mxu0 0.0
    %2304 = vmatprep.subr.mxu0 0.0
    %2305 = vmatpush1.msra.mxu0 0.0
    %2306 = vmatprep.subr.mxu0 0.0
    %2307 = vmatpush1.msra.mxu0 0.0
    %2308 = vmatprep.subr.mxu0 0.0
    %2309 = vmatpush1.msra.mxu0 0.0
    %2310 = vmatprep.subr.mxu0 0.0
    %2311 = vmatpush1.msra.mxu0 0.0
    %2312 = vmatprep.subr.mxu0 0.0
    %2313 = vmatpush1.msra.mxu0 0.0
    %2314 = vmatprep.subr.mxu0 0.0
    %2315 = vmatpush1.msra.mxu0 0.0
    %2316 = vmatprep.subr.mxu0 0.0
    %2317 = vmatpush1.msra.mxu0 0.0
    %2318 = vmatprep.subr.mxu0 0.0
    %2319 = vmatpush1.msra.mxu0 0.0
    %2320 = vmatprep.subr.mxu0 0.0
    %2321 = vmatpush1.msra.mxu0 0.0
    %2322 = vmatprep.subr.mxu0 0.0
    %2323 = vmatpush1.msra.mxu0 0.0
    %2324 = vmatprep.subr.mxu0 0.0
    %2325 = vmatpush1.msra.mxu0 0.0
    %2326 = vmatprep.subr.mxu0 0.0
    %2327 = vmatpush1.msra.mxu0 0.0
    %2328 = vmatprep.subr.mxu0 0.0
    %2329 = vmatpush1.msra.mxu0 0.0
    %2330 = vmatprep.subr.mxu0 0.0
    %2331 = vmatpush1.msra.mxu0 0.0
    %2332 = vmatprep.subr.mxu0 0.0
    %2333 = vmatpush1.msra.mxu0 0.0
    %2334 = vmatprep.subr.mxu0 0.0
    %2335 = vmatpush1.msra.mxu0 0.0
    %2336 = vmatprep.subr.mxu0 0.0
    %2337 = vmatpush1.msra.mxu0 0.0
    %2338 = vmatprep.subr.mxu0 0.0
    %2339 = vmatpush1.msra.mxu0 0.0
    %2340 = vmatprep.subr.mxu0 0.0
    %2341 = vmatpush1.msra.mxu0 0.0
    %2342 = vmatprep.subr.mxu0 0.0
    %2343 = vmatpush1.msra.mxu0 0.0
    %2344 = vmatprep.subr.mxu0 0.0
    %2345 = vmatpush1.msra.mxu0 0.0
    %2346 = vmatprep.subr.mxu0 0.0
    %2347 = vmatpush1.msra.mxu0 0.0
    %2348 = vmatprep.subr.mxu0 0.0
    %2349 = vmatpush1.msra.mxu0 0.0
    %2350 = vmatprep.subr.mxu0 0.0
    %2351 = vmatpush1.msra.mxu0 0.0
    %2352 = vmatprep.subr.mxu0 0.0
    %2353 = vmatpush1.msra.mxu0 0.0
    %2354 = vmatprep.subr.mxu0 0.0
    %2355 = vmatpush1.msra.mxu0 0.0
    %2356 = vmatprep.mubr.f32.mxu0 0.0
    %2357 = vmatmul.mubr.f32.gmra.mrb[0].mxu0 %v2290
    %v2358 = vpop.f32.mrb[0].mxu0
    %v2359 = vadd.f32 0.0, %v2358
    %v2360 = vpop.f32.mrb[0].mxu0
    %v2361 = vadd.f32 0.0, %v2360
    %2362 = vdwg.mxu0
    %v2363 = vlaneseq
    %v2364 = vshrl.u32 %v2363, 7
    %v2365 = vsub.s32 0, %v2364
    %v2366 = vrot.slane %v2359, %v2365
    %v2367 = vlaneseq
    %v2368 = vshrl.u32 %v2367, 7
    %v2369 = vsub.s32 0, %v2368
    %v2370 = vrot.slane %v2361, %v2369
    %v2371 = vadd.f32 %v2275, %v2366
    %v2372 = vadd.f32 %v2276, %v2370
    %v2373 = vadd.f32 %v2277, %v2366
    %v2374 = vadd.f32 %v2278, %v2370
    %v2375 = vadd.f32 %v2279, %v2366
    %v2376 = vadd.f32 %v2280, %v2370
    %v2377 = vadd.f32 %v2281, %v2366
    %v2378 = vadd.f32 %v2282, %v2370
    %v2379 = vadd.f32 %v2283, %v2366
    %v2380 = vadd.f32 %v2284, %v2370
    %v2381 = vmax.f32 %v2371, 0.0
    %v2382 = vmax.f32 %v2372, 0.0
    %v2383 = vmax.f32 %v2373, 0.0
    %v2384 = vmax.f32 %v2374, 0.0
    %v2385 = vmax.f32 %v2375, 0.0
    %v2386 = vmax.f32 %v2376, 0.0
    %v2387 = vmax.f32 %v2377, 0.0
    %v2388 = vmax.f32 %v2378, 0.0
    %v2389 = vmax.f32 %v2379, 0.0
    %v2390 = vmax.f32 %v2380, 0.0
    %v2391 = vmul.f32 %v2381, %v746
    %v2392 = vmul.f32 %v2382, %v746
    %v2393 = vmul.f32 %v2383, %v751
    %v2394 = vmul.f32 %v2384, %v751
    %v2395 = vmul.f32 %v2385, %v756
    %v2396 = vmul.f32 %v2386, %v756
    %v2397 = vmul.f32 %v2387, %v761
    %v2398 = vmul.f32 %v2388, %v761
    %v2399 = vmul.f32 %v2389, %v766
    %v2400 = vmul.f32 %v2390, %v766
    %2401 = vst [vmem:[#allocation7] sm:$0xff] %v2391
    %2402 = vst.msk [vmem:[#allocation7 + $0x8] sm:$0xff] %vm778, %v2392
    %2403 = vst [vmem:[#allocation7 + $0x10] sm:$0xff] %v2393
    %2404 = vst.msk [vmem:[#allocation7 + $0x18] sm:$0xff] %vm778, %v2394
    %2405 = vst [vmem:[#allocation7 + $0x20] sm:$0xff] %v2395
    %2406 = vst.msk [vmem:[#allocation7 + $0x28] sm:$0xff] %vm778, %v2396
    %2407 = vst [vmem:[#allocation7 + $0x30] sm:$0xff] %v2397
    %2408 = vst.msk [vmem:[#allocation7 + $0x38] sm:$0xff] %vm778, %v2398
    %2409 = vst [vmem:[#allocation7 + $0x40] sm:$0xf] %v2399
    %vm2410 = vcmask 125952
    %2411 = vst.msk [vmem:[#allocation7 + $0x48] sm:$0xf] %vm2410, %v2400
    // Predicated region
    $region54: #{tpu_custom_call.1} parent=1 // pred_check
      _
    $region55: #{tpu_custom_call.1} parent=1 // pred_check_branch
      %2413 = sbr.rel (0) target = $region57
    $region56: #{tpu_custom_call.1} parent=1 // pred_region
      %s2415 = ssub.s32 1280, 1280
      %2416 = vsyncadd [#allocation4], %s2415
      %s2417 = sshll.u32 [#allocation7], 4
      %s2418 = int_to_ptr.vmem [resolvable:$true] %s2417
      %2423 = dma.vmem_to_hbm [thread:$0]  %s2418, 1280, %s11, [#allocation4], 256, 256, 16
    $region57: #{tpu_custom_call.1} parent=1 // pred_fallthru
      _
    // Predicated region
    $region58: #{tpu_custom_call.1} parent=1 // pred_check
      _
    $region59: #{tpu_custom_call.1} parent=1 // pred_check_branch
      %2425 = sbr.rel (0) target = $region61
    $region60: #{tpu_custom_call.1} parent=1 // pred_region
      %2426 = dma.done [#allocation4], 1280
    $region61: #{tpu_custom_call.1} parent=1 // pred_fallthru
      _
    %2427 = vsyncpa [#allocation3], 1
    %2428 = vsyncpa [#allocation6], 1
    %2429 = vsyncpa [#allocation4], 1

</llo_original>
